<compile_context>
chip_gen: v7x
topology: tpu7x:2x2x1
jax: 0.10.0
libtpu: 0.0.40
codegen_flags: <defaults>
</compile_context>

<pallas_src>
import jax
import jax.numpy as jnp
from jax.experimental import pallas as pl
from jax.experimental.pallas import tpu as pltpu


def _tensorcores_per_chip():
    """Crude generation sniff: v7x exposes 2 TensorCores per chip, v5e/v6e 1."""
    try:
        kind = jax.devices()[0].device_kind.lower()
    except Exception:
        return 1
    for tag in ("v7", "7x", "tpu7"):
        if tag in kind:
            return 2
    return 1


def self_attn_pallas(x_nchw, wq, bq, wk, bk, wv, bv, gamma):
    """x_nchw: (B, C, W, H) float32.  Returns (out (B,C,W,H), attention (B,N,N))."""
    B, C, W, H = x_nchw.shape
    N = W * H
    f32 = jnp.float32

    # Channel-major flattened spatial: pure reshape, no transpose.
    x3 = x_nchw.reshape(B, C, N).astype(f32)

    wq = wq.astype(f32); wk = wk.astype(f32); wv = wv.astype(f32)
    bq = bq.astype(f32); bk = bk.astype(f32); bv = bv.astype(f32)

    # Fold Q/K 1x1 convs: M = Wq @ Wk^T; kernel wants M^T = Wk @ Wq^T.
    # Of the bias terms of (xWq+bq)(xWk+bk)^T only the key-side (Wk@bq).x_j
    # depends on the softmax axis; the rest are per-row constants and cancel
    # exactly in softmax(dim=-1), so they are dropped.
    mt = jnp.dot(wk, wq.T)                              # (C, C)
    wkbq = jnp.dot(wk, bq).reshape(C, 1)                # (C, 1)
    # Stack with the value conv: one (2C, C) weight, one (2C, 1) bias column.
    w_stack = jnp.concatenate([mt, wv.T], axis=0)       # (2C, C)
    b_stack = jnp.concatenate([wkbq, bv.reshape(C, 1)], axis=0)   # (2C, 1)
    gamma_s = jnp.asarray(gamma, f32).reshape(1)

    # Batch-block choice: single grid step on single-TC chips, per-b parallel
    # grid on v7x so both TensorCores are used.
    bb = 1 if (_tensorcores_per_chip() > 1 and B > 1) else B
    grid = (B // bb,)

    def kernel(x_ref, w_ref, b_ref, gamma_ref, out_ref, attn_ref):
        w = w_ref[...]                                  # (2C, C)
        b = b_ref[...]                                  # (2C, 1)
        gamma_v = gamma_ref[0]                          # scalar from SMEM
        for bi in range(bb):                            # static, bb is tiny
            x = x_ref[bi]                               # (C, N) channel-major

            # One stacked MXU matmul: top C rows = g + (Wk@bq) column,
            # bottom C rows = Wv^T x + bv  (value projection, transposed).
            gv = jnp.dot(w, x, preferred_element_type=jnp.float32) + b   # (2C, N)
            g = gv[:C]                                  # (C, N), tile-aligned slice
            vT = gv[C:]                                 # (C, N)

            # energy[i, j] = sum_c g[c, i] * x[c, j]   (query i, key j)
            energy = jax.lax.dot_general(
                g, x, (((0,), (0,)), ((), ())),
                preferred_element_type=jnp.float32)     # (N, N)

            # Row softmax over keys, all f32.
            e_max = jnp.max(energy, axis=-1, keepdims=True)
            p = jnp.exp(energy - e_max)
            l = jnp.sum(p, axis=-1, keepdims=True)
            r = pl.reciprocal(l, approx=True)           # EUP slot
            r = r * (2.0 - l * r)                       # Newton step -> ~f32-exact
            attn = p * r                                # (N, N)

            # o[c, i] = sum_j vT[c, j] * attn[i, j]  (== bmm(proj_value, attn^T))
            o = jax.lax.dot_general(
                vT, attn, (((1,), (1,)), ((), ())),
                preferred_element_type=jnp.float32)     # (C, N)

            out_ref[bi] = gamma_v * o + x               # lane-dense store
            attn_ref[bi] = attn

    out_cn, attn = pl.pallas_call(
        kernel,
        out_shape=(jax.ShapeDtypeStruct((B, C, N), f32),
                   jax.ShapeDtypeStruct((B, N, N), f32)),
        grid=grid,
        in_specs=[
            pl.BlockSpec((bb, C, N), lambda b: (b, 0, 0)),      # x (channel-major)
            pl.BlockSpec((2 * C, C), lambda b: (0, 0)),         # stacked weights
            pl.BlockSpec((2 * C, 1), lambda b: (0, 0)),         # stacked bias column
            pl.BlockSpec(memory_space=pltpu.MemorySpace.SMEM),  # gamma scalar
        ],
        out_specs=(pl.BlockSpec((bb, C, N), lambda b: (b, 0, 0)),
                   pl.BlockSpec((bb, N, N), lambda b: (b, 0, 0))),
        compiler_params=pltpu.CompilerParams(dimension_semantics=("parallel",)),
    )(x3, w_stack, b_stack, gamma_s)

    out = out_cn.reshape(B, C, W, H)                    # pure reshape, no transpose
    return out, attn


def self_attn_reference(x_nchw, wq, bq, wk, bk, wv, bv, gamma):
    """Pure-JAX reference mirroring the PyTorch forward (full bias terms)."""
    B, C, W, H = x_nchw.shape
    N = W * H
    xf = x_nchw.reshape(B, C, N)                                    # (B, C, N)
    proj_q = jnp.einsum('io,bin->bno', wq, xf) + bq[None, None, :]  # (B, N, C8)
    proj_k = jnp.einsum('io,bin->bon', wk, xf) + bk[None, :, None]  # (B, C8, N)
    energy = jnp.einsum('bnc,bcm->bnm', proj_q, proj_k)             # (B, N, N)
    attn = jax.nn.softmax(energy, axis=-1)
    proj_v = jnp.einsum('io,bin->bon', wv, xf) + bv[None, :, None]  # (B, C, N)
    out = jnp.einsum('bcj,bij->bci', proj_v, attn)                  # (B, C, N)
    out = out.reshape(B, C, W, H)
    return gamma * out + x_nchw, attn


if __name__ == "__main__":
    B, C, W, H = 2, 16, 16, 16
    C8 = C // 8

    key = jax.random.PRNGKey(0)
    kx, kq, kk, kv, kbq, kbk, kbv = jax.random.split(key, 7)

    x = jax.random.normal(kx, (B, C, W, H), dtype=jnp.float32)

    # Parameters follow nn.Conv2d(in, out, 1), stored as (in, out).
    wq = jax.random.normal(kq, (C, C8), dtype=jnp.float32) * 0.1
    wk = jax.random.normal(kk, (C, C8), dtype=jnp.float32) * 0.1
    wv = jax.random.normal(kv, (C, C), dtype=jnp.float32) * 0.1
    bq = jax.random.normal(kbq, (C8,), dtype=jnp.float32) * 0.1
    bk = jax.random.normal(kbk, (C8,), dtype=jnp.float32) * 0.1
    bv = jax.random.normal(kbv, (C,), dtype=jnp.float32) * 0.1
    # gamma is nn.Parameter(torch.zeros(1)) in the module; use a nonzero value
    # so the attention branch actually contributes in the check.
    gamma = jnp.float32(0.5)

    out, attn = self_attn_pallas(x, wq, bq, wk, bk, wv, bv, gamma)
    out = jax.block_until_ready(out)
    attn = jax.block_until_ready(attn)

    out_ref, attn_ref = self_attn_reference(x, wq, bq, wk, bk, wv, bv, gamma)
    assert out.shape == (B, C, W, H) and attn.shape == (B, W * H, W * H)
    assert jnp.allclose(attn, attn_ref, atol=1e-4, rtol=1e-3), "attention mismatch"
    assert jnp.allclose(out, out_ref, atol=1e-4, rtol=1e-3), "output mismatch"

    print("KERNEL_OK")
</pallas_src>

<mosaic_0001>
module attributes {stable_mosaic.version = 11 : i64} {
  func.func @kernel(%arg0: i32, %arg1: memref<2x16x256xf32, #tpu.memory_space<vmem>>, %arg2: memref<32x16xf32, #tpu.memory_space<vmem>>, %arg3: memref<32x1xf32, #tpu.memory_space<vmem>>, %arg4: memref<1xf32, #tpu.memory_space<smem>>, %arg5: memref<2x16x256xf32, #tpu.memory_space<vmem>>, %arg6: memref<2x256x256xf32, #tpu.memory_space<vmem>>) attributes {dimension_semantics = [#tpu.dimension_semantics<parallel>], iteration_bounds = array<i64: 1>, scalar_prefetch = 0 : i64, scratch_operands = 0 : i64, tpu.core_type = #tpu.core_type<tc>, window_params = [{transform_indices = @transform_0, window_bounds = array<i64: 2, 16, 256>}, {pipeline_mode = #tpu.pipeline_mode<synchronous>, transform_indices = @transform_1, window_bounds = array<i64: 32, 16>}, {pipeline_mode = #tpu.pipeline_mode<synchronous>, transform_indices = @transform_2, window_bounds = array<i64: 32, 1>}, {transform_indices = @transform_3, window_bounds = array<i64: 1>}, {transform_indices = @transform_4, window_bounds = array<i64: 2, 16, 256>}, {transform_indices = @transform_5, window_bounds = array<i64: 2, 256, 256>}]} {
    %c0 = arith.constant 0 : index
    %c0_0 = arith.constant 0 : index
    %0 = vector.load %arg2[%c0, %c0_0] : memref<32x16xf32, #tpu.memory_space<vmem>>, vector<32x16xf32>
    %c0_1 = arith.constant 0 : index
    %c0_2 = arith.constant 0 : index
    %1 = vector.load %arg3[%c0_1, %c0_2] : memref<32x1xf32, #tpu.memory_space<vmem>>, vector<32x1xf32>
    %c0_3 = arith.constant 0 : index
    %2 = memref.load %arg4[%c0_3] : memref<1xf32, #tpu.memory_space<smem>>
    %c0_4 = arith.constant 0 : index
    %c0_5 = arith.constant 0 : index
    %c0_6 = arith.constant 0 : index
    %3 = vector.load %arg1[%c0_4, %c0_5, %c0_6] : memref<2x16x256xf32, #tpu.memory_space<vmem>>, vector<1x16x256xf32>
    %4 = vector.shape_cast %3 : vector<1x16x256xf32> to vector<16x256xf32>
    %cst = arith.constant dense<0.000000e+00> : vector<32x256xf32>
    %5 = tpu.matmul %0, %4, %cst {dimension_numbers = #tpu.dot_dimension_numbers<[1], [0], [0], [1], [0, 0, 1, 1], [], []>} : vector<32x16xf32>, vector<16x256xf32>, vector<32x256xf32> -> vector<32x256xf32>
    %6 = vector.broadcast %1 : vector<32x1xf32> to vector<32x256xf32>
    %7 = arith.addf %5, %6 : vector<32x256xf32>
    %8 = vector.extract_strided_slice %7 {offsets = [0, 0], sizes = [16, 256], strides = [1, 1]} : vector<32x256xf32> to vector<16x256xf32>
    %9 = vector.extract_strided_slice %7 {offsets = [16, 0], sizes = [16, 256], strides = [1, 1]} : vector<32x256xf32> to vector<16x256xf32>
    %cst_7 = arith.constant dense<0.000000e+00> : vector<256x256xf32>
    %10 = tpu.matmul %8, %4, %cst_7 {dimension_numbers = #tpu.dot_dimension_numbers<[0], [0], [1], [1], [0, 1, 1, 1], [], []>} : vector<16x256xf32>, vector<16x256xf32>, vector<256x256xf32> -> vector<256x256xf32>
    %cst_8 = arith.constant dense<0xFF800000> : vector<256xf32>
    %11 = vector.multi_reduction <maximumf>, %10, %cst_8 [1] : vector<256x256xf32> to vector<256xf32>
    %12 = vector.shape_cast %11 : vector<256xf32> to vector<256x1xf32>
    %13 = vector.broadcast %12 : vector<256x1xf32> to vector<256x256xf32>
    %14 = arith.subf %10, %13 : vector<256x256xf32>
    %15 = math.exp %14 : vector<256x256xf32>
    %cst_9 = arith.constant dense<0.000000e+00> : vector<256xf32>
    %16 = vector.multi_reduction <add>, %15, %cst_9 [1] : vector<256x256xf32> to vector<256xf32>
    %17 = vector.shape_cast %16 : vector<256xf32> to vector<256x1xf32>
    %18 = tpu.reciprocal %17 {approx = true} : vector<256x1xf32> -> vector<256x1xf32>
    %19 = arith.mulf %17, %18 : vector<256x1xf32>
    %cst_10 = arith.constant 2.000000e+00 : f32
    %20 = vector.broadcast %cst_10 : f32 to vector<256x1xf32>
    %21 = arith.subf %20, %19 : vector<256x1xf32>
    %22 = arith.mulf %18, %21 : vector<256x1xf32>
    %23 = vector.broadcast %22 : vector<256x1xf32> to vector<256x256xf32>
    %24 = arith.mulf %15, %23 : vector<256x256xf32>
    %cst_11 = arith.constant dense<0.000000e+00> : vector<16x256xf32>
    %25 = tpu.matmul %9, %24, %cst_11 {dimension_numbers = #tpu.dot_dimension_numbers<[1], [1], [0], [0], [0, 0, 1, 0], [], []>} : vector<16x256xf32>, vector<256x256xf32>, vector<16x256xf32> -> vector<16x256xf32>
    %26 = vector.broadcast %2 : f32 to vector<16x256xf32>
    %27 = arith.mulf %26, %25 : vector<16x256xf32>
    %28 = arith.addf %27, %4 : vector<16x256xf32>
    %c0_12 = arith.constant 0 : index
    %c0_13 = arith.constant 0 : index
    %c0_14 = arith.constant 0 : index
    %29 = vector.load %arg5[%c0_12, %c0_13, %c0_14] : memref<2x16x256xf32, #tpu.memory_space<vmem>>, vector<1x16x256xf32>
    %30 = vector.shape_cast %29 : vector<1x16x256xf32> to vector<16x256xf32>
    %31 = vector.shape_cast %28 : vector<16x256xf32> to vector<1x16x256xf32>
    tpu.vector_store %arg5[%c0_12, %c0_13, %c0_14], %31 {strides = array<i32>} : memref<2x16x256xf32, #tpu.memory_space<vmem>>, vector<1x16x256xf32>,
    %c0_15 = arith.constant 0 : index
    %c0_16 = arith.constant 0 : index
    %c0_17 = arith.constant 0 : index
    %32 = vector.load %arg6[%c0_15, %c0_16, %c0_17] : memref<2x256x256xf32, #tpu.memory_space<vmem>>, vector<1x256x256xf32>
    %33 = vector.shape_cast %32 : vector<1x256x256xf32> to vector<256x256xf32>
    %34 = vector.shape_cast %24 : vector<256x256xf32> to vector<1x256x256xf32>
    tpu.vector_store %arg6[%c0_15, %c0_16, %c0_17], %34 {strides = array<i32>} : memref<2x256x256xf32, #tpu.memory_space<vmem>>, vector<1x256x256xf32>,
    %c1 = arith.constant 1 : index
    %c0_18 = arith.constant 0 : index
    %c0_19 = arith.constant 0 : index
    %35 = vector.load %arg1[%c1, %c0_18, %c0_19] : memref<2x16x256xf32, #tpu.memory_space<vmem>>, vector<1x16x256xf32>
    %36 = vector.shape_cast %35 : vector<1x16x256xf32> to vector<16x256xf32>
    %cst_20 = arith.constant dense<0.000000e+00> : vector<32x256xf32>
    %37 = tpu.matmul %0, %36, %cst_20 {dimension_numbers = #tpu.dot_dimension_numbers<[1], [0], [0], [1], [0, 0, 1, 1], [], []>} : vector<32x16xf32>, vector<16x256xf32>, vector<32x256xf32> -> vector<32x256xf32>
    %38 = vector.broadcast %1 : vector<32x1xf32> to vector<32x256xf32>
    %39 = arith.addf %37, %38 : vector<32x256xf32>
    %40 = vector.extract_strided_slice %39 {offsets = [0, 0], sizes = [16, 256], strides = [1, 1]} : vector<32x256xf32> to vector<16x256xf32>
    %41 = vector.extract_strided_slice %39 {offsets = [16, 0], sizes = [16, 256], strides = [1, 1]} : vector<32x256xf32> to vector<16x256xf32>
    %cst_21 = arith.constant dense<0.000000e+00> : vector<256x256xf32>
    %42 = tpu.matmul %40, %36, %cst_21 {dimension_numbers = #tpu.dot_dimension_numbers<[0], [0], [1], [1], [0, 1, 1, 1], [], []>} : vector<16x256xf32>, vector<16x256xf32>, vector<256x256xf32> -> vector<256x256xf32>
    %cst_22 = arith.constant dense<0xFF800000> : vector<256xf32>
    %43 = vector.multi_reduction <maximumf>, %42, %cst_22 [1] : vector<256x256xf32> to vector<256xf32>
    %44 = vector.shape_cast %43 : vector<256xf32> to vector<256x1xf32>
    %45 = vector.broadcast %44 : vector<256x1xf32> to vector<256x256xf32>
    %46 = arith.subf %42, %45 : vector<256x256xf32>
    %47 = math.exp %46 : vector<256x256xf32>
    %cst_23 = arith.constant dense<0.000000e+00> : vector<256xf32>
    %48 = vector.multi_reduction <add>, %47, %cst_23 [1] : vector<256x256xf32> to vector<256xf32>
    %49 = vector.shape_cast %48 : vector<256xf32> to vector<256x1xf32>
    %50 = tpu.reciprocal %49 {approx = true} : vector<256x1xf32> -> vector<256x1xf32>
    %51 = arith.mulf %49, %50 : vector<256x1xf32>
    %cst_24 = arith.constant 2.000000e+00 : f32
    %52 = vector.broadcast %cst_24 : f32 to vector<256x1xf32>
    %53 = arith.subf %52, %51 : vector<256x1xf32>
    %54 = arith.mulf %50, %53 : vector<256x1xf32>
    %55 = vector.broadcast %54 : vector<256x1xf32> to vector<256x256xf32>
    %56 = arith.mulf %47, %55 : vector<256x256xf32>
    %cst_25 = arith.constant dense<0.000000e+00> : vector<16x256xf32>
    %57 = tpu.matmul %41, %56, %cst_25 {dimension_numbers = #tpu.dot_dimension_numbers<[1], [1], [0], [0], [0, 0, 1, 0], [], []>} : vector<16x256xf32>, vector<256x256xf32>, vector<16x256xf32> -> vector<16x256xf32>
    %58 = vector.broadcast %2 : f32 to vector<16x256xf32>
    %59 = arith.mulf %58, %57 : vector<16x256xf32>
    %60 = arith.addf %59, %36 : vector<16x256xf32>
    %c1_26 = arith.constant 1 : index
    %c0_27 = arith.constant 0 : index
    %c0_28 = arith.constant 0 : index
    %61 = vector.load %arg5[%c1_26, %c0_27, %c0_28] : memref<2x16x256xf32, #tpu.memory_space<vmem>>, vector<1x16x256xf32>
    %62 = vector.shape_cast %61 : vector<1x16x256xf32> to vector<16x256xf32>
    %63 = vector.shape_cast %60 : vector<16x256xf32> to vector<1x16x256xf32>
    tpu.vector_store %arg5[%c1_26, %c0_27, %c0_28], %63 {strides = array<i32>} : memref<2x16x256xf32, #tpu.memory_space<vmem>>, vector<1x16x256xf32>,
    %c1_29 = arith.constant 1 : index
    %c0_30 = arith.constant 0 : index
    %c0_31 = arith.constant 0 : index
    %64 = vector.load %arg6[%c1_29, %c0_30, %c0_31] : memref<2x256x256xf32, #tpu.memory_space<vmem>>, vector<1x256x256xf32>
    %65 = vector.shape_cast %64 : vector<1x256x256xf32> to vector<256x256xf32>
    %66 = vector.shape_cast %56 : vector<256x256xf32> to vector<1x256x256xf32>
    tpu.vector_store %arg6[%c1_29, %c0_30, %c0_31], %66 {strides = array<i32>} : memref<2x256x256xf32, #tpu.memory_space<vmem>>, vector<1x256x256xf32>,
    return
  }
  func.func @transform_0(%arg0: i32) -> (i32, i32, i32) {
    %c0_i32 = arith.constant 0 : i32
    %c0_i32_0 = arith.constant 0 : i32
    %c0_i32_1 = arith.constant 0 : i32
    return %arg0, %c0_i32, %c0_i32_0 : i32, i32, i32
  }
  func.func @transform_1(%arg0: i32) -> (i32, i32) {
    %c0_i32 = arith.constant 0 : i32
    %c0_i32_0 = arith.constant 0 : i32
    %c0_i32_1 = arith.constant 0 : i32
    return %c0_i32, %c0_i32_0 : i32, i32
  }
  func.func @transform_2(%arg0: i32) -> (i32, i32) {
    %c0_i32 = arith.constant 0 : i32
    %c0_i32_0 = arith.constant 0 : i32
    %c0_i32_1 = arith.constant 0 : i32
    return %c0_i32, %c0_i32_0 : i32, i32
  }
  func.func @transform_3(%arg0: i32) -> i32 {
    %c0_i32 = arith.constant 0 : i32
    %c0_i32_0 = arith.constant 0 : i32
    return %c0_i32 : i32
  }
  func.func @transform_4(%arg0: i32) -> (i32, i32, i32) {
    %c0_i32 = arith.constant 0 : i32
    %c0_i32_0 = arith.constant 0 : i32
    %c0_i32_1 = arith.constant 0 : i32
    return %arg0, %c0_i32, %c0_i32_0 : i32, i32, i32
  }
  func.func @transform_5(%arg0: i32) -> (i32, i32, i32) {
    %c0_i32 = arith.constant 0 : i32
    %c0_i32_0 = arith.constant 0 : i32
    %c0_i32_1 = arith.constant 0 : i32
    return %arg0, %c0_i32, %c0_i32_0 : i32, i32, i32
  }
}

</mosaic_0001>

<llo_original>
// kernel: tpu_custom_call.1
$region0: #{tpu_custom_call.1}
  #allocation0 [shape = 'u32[]', space=smem, size = 0x4, offset = 0x4, fixed_abs, tag = 'smem constant byte address 0x4 - core index']
  #allocation1 [shape = 'u32[144,128]{1,0:T(1,128)}', space=vmem, size = 0x12000, scoped, tag = 'internal scratch']
  #allocation2 [shape = 'f32[1]{0:T(128)S(6)}', space=smem, size = 0x200, scoped, tag = 'scoped memory for tpu_custom_call.1']
  %s0 = inlined_call_operand.vmem [shape: f32[2,16,256], index: 0, kind: input, shape index: {}]
  %s1 = inlined_call_operand.vmem [shape: f32[32,16], index: 1, kind: input, shape index: {}]
  %s2 = inlined_call_operand.vmem [shape: f32[32,1], index: 2, kind: input, shape index: {}]
  %s3 = inlined_call_operand.<no memory space> [shape: f32[1], index: 3, kind: input, shape index: {}]
  %s4 = inlined_call_operand.hbm [shape: f32[2,16,256], index: 4, kind: output, shape index: {0}]
  %s5 = inlined_call_operand.hbm [shape: f32[2,256,256], index: 5, kind: output, shape index: {1}]
  %6 = xla_tuple %s4, %s5
  %s7 = sld [smem:[#allocation0]]
  $region34: #{tpu_custom_call.1} parent=0
    _
  %s9 = ssub.s32 1, %s7
  %s10 = scalar_select 0, %s9, %s7
  %11 = sst [smem:[#allocation2]] %s3
  $region1: #{tpu_custom_call.1} parent=0
    #allocation3 [shape = 'u8[32768]{0}', space=vmem, size = 0x8000, scoped, tag = 'output window, operand 0, single buffered']
    #allocation4 [shape = 's32[1]{0}', space=sflag, size = 0x4, scoped, tag = 'scoped memory for tpu_custom_call.1']
    #allocation5 [shape = 'u8[524288]{0}', space=vmem, size = 0x80000, scoped, tag = 'output window, operand 1, single buffered']
    #allocation6 [shape = 's32[1]{0}', space=sflag, size = 0x4, scoped, tag = 'scoped memory for tpu_custom_call.1']
    %12 = vsyncpa [#allocation4], 0
    %13 = vsyncpa [#allocation6], 0
    // Predicated region
    $region2: #{tpu_custom_call.1} parent=1 // pred_check
      _
    $region3: #{tpu_custom_call.1} parent=1 // pred_check_branch
      %15 = sbr.rel (0) target = $region5
    $region4: #{tpu_custom_call.1} parent=1 // pred_region
      _
    $region5: #{tpu_custom_call.1} parent=1 // pred_fallthru
      _
    // Predicated region
    $region6: #{tpu_custom_call.1} parent=1 // pred_check
      _
    $region7: #{tpu_custom_call.1} parent=1 // pred_check_branch
      %17 = sbr.rel (0) target = $region9
    $region8: #{tpu_custom_call.1} parent=1 // pred_region
      _
    $region9: #{tpu_custom_call.1} parent=1 // pred_fallthru
      _
    // Predicated region
    $region10: #{tpu_custom_call.1} parent=1 // pred_check
      _
    $region11: #{tpu_custom_call.1} parent=1 // pred_check_branch
      %19 = sbr.rel (0) target = $region13
    $region12: #{tpu_custom_call.1} parent=1 // pred_region
      _
    $region13: #{tpu_custom_call.1} parent=1 // pred_fallthru
      _
    // Predicated region
    $region14: #{tpu_custom_call.1} parent=1 // pred_check
      _
    $region15: #{tpu_custom_call.1} parent=1 // pred_check_branch
      %21 = sbr.rel (0) target = $region17
    $region16: #{tpu_custom_call.1} parent=1 // pred_region
      _
    $region17: #{tpu_custom_call.1} parent=1 // pred_fallthru
      _
    %v22 = vld [vmem:[%s1] sm:$0xff]
    %v23 = vld [vmem:[%s1 + $0x8] sm:$0xff]
    %v24 = vld [vmem:[%s1 + $0x10] sm:$0xff]
    %v25 = vld [vmem:[%s1 + $0x18] sm:$0xff]
    %v26 = vld [vmem:[%s2] sm:$0xff]
    %v27 = vld [vmem:[%s2 + $0x8] sm:$0xff]
    %v28 = vld [vmem:[%s2 + $0x10] sm:$0xff]
    %v29 = vld [vmem:[%s2 + $0x18] sm:$0xff]
    %s30 = sld [smem:[#allocation2]]
    %v31 = vld [vmem:[%s0] sm:$0xff]
    %v32 = vld [vmem:[%s0 + $0x8] sm:$0xff]
    %v33 = vld [vmem:[%s0 + $0x10] sm:$0xff]
    %v34 = vld [vmem:[%s0 + $0x18] sm:$0xff]
    %36 = vset.pattern.permute.xlu0 0
    %37 = vperm.xlu0 %36, %v26
    %v38 = vpop.permute.xlu0 %37
    %41 = vset.pattern.permute.xlu0 0
    %42 = vperm.xlu0 %41, %v27
    %v43 = vpop.permute.xlu0 %42
    %46 = vset.pattern.permute.xlu0 0
    %47 = vperm.xlu0 %46, %v28
    %v48 = vpop.permute.xlu0 %47
    %51 = vset.pattern.permute.xlu0 0
    %52 = vperm.xlu0 %51, %v29
    %v53 = vpop.permute.xlu0 %52
    %vm55 = vcmask 130048
    %v57 = vsel %vm55, %v22, 0
    %v60 = vsel %vm55, %v23, 0
    %v63 = vsel %vm55, %v24, 0
    %v66 = vsel %vm55, %v25, 0
    %68 = vmatprep.subr.mxu0 %v32
    %69 = vmatpush1.msra.mxu0 %v31
    %70 = vmatprep.subr.mxu0 %v34
    %71 = vmatpush1.msra.mxu0 %v33
    %72 = vmatprep.subr.mxu0 0.0
    %73 = vmatpush1.msra.mxu0 0.0
    %74 = vmatprep.subr.mxu0 0.0
    %75 = vmatpush1.msra.mxu0 0.0
    %76 = vmatprep.subr.mxu0 0.0
    %77 = vmatpush1.msra.mxu0 0.0
    %78 = vmatprep.subr.mxu0 0.0
    %79 = vmatpush1.msra.mxu0 0.0
    %80 = vmatprep.subr.mxu0 0.0
    %81 = vmatpush1.msra.mxu0 0.0
    %82 = vmatprep.subr.mxu0 0.0
    %83 = vmatpush1.msra.mxu0 0.0
    %84 = vmatprep.subr.mxu0 0.0
    %85 = vmatpush1.msra.mxu0 0.0
    %86 = vmatprep.subr.mxu0 0.0
    %87 = vmatpush1.msra.mxu0 0.0
    %88 = vmatprep.subr.mxu0 0.0
    %89 = vmatpush1.msra.mxu0 0.0
    %90 = vmatprep.subr.mxu0 0.0
    %91 = vmatpush1.msra.mxu0 0.0
    %92 = vmatprep.subr.mxu0 0.0
    %93 = vmatpush1.msra.mxu0 0.0
    %94 = vmatprep.subr.mxu0 0.0
    %95 = vmatpush1.msra.mxu0 0.0
    %96 = vmatprep.subr.mxu0 0.0
    %97 = vmatpush1.msra.mxu0 0.0
    %98 = vmatprep.subr.mxu0 0.0
    %99 = vmatpush1.msra.mxu0 0.0
    %100 = vmatprep.subr.mxu0 0.0
    %101 = vmatpush1.msra.mxu0 0.0
    %102 = vmatprep.subr.mxu0 0.0
    %103 = vmatpush1.msra.mxu0 0.0
    %104 = vmatprep.subr.mxu0 0.0
    %105 = vmatpush1.msra.mxu0 0.0
    %106 = vmatprep.subr.mxu0 0.0
    %107 = vmatpush1.msra.mxu0 0.0
    %108 = vmatprep.subr.mxu0 0.0
    %109 = vmatpush1.msra.mxu0 0.0
    %110 = vmatprep.subr.mxu0 0.0
    %111 = vmatpush1.msra.mxu0 0.0
    %112 = vmatprep.subr.mxu0 0.0
    %113 = vmatpush1.msra.mxu0 0.0
    %114 = vmatprep.subr.mxu0 0.0
    %115 = vmatpush1.msra.mxu0 0.0
    %116 = vmatprep.subr.mxu0 0.0
    %117 = vmatpush1.msra.mxu0 0.0
    %118 = vmatprep.subr.mxu0 0.0
    %119 = vmatpush1.msra.mxu0 0.0
    %120 = vmatprep.subr.mxu0 0.0
    %121 = vmatpush1.msra.mxu0 0.0
    %122 = vmatprep.subr.mxu0 0.0
    %123 = vmatpush1.msra.mxu0 0.0
    %124 = vmatprep.subr.mxu0 0.0
    %125 = vmatpush1.msra.mxu0 0.0
    %126 = vmatprep.subr.mxu0 0.0
    %127 = vmatpush1.msra.mxu0 0.0
    %128 = vmatprep.subr.mxu0 0.0
    %129 = vmatpush1.msra.mxu0 0.0
    %130 = vmatprep.subr.mxu0 0.0
    %131 = vmatpush1.msra.mxu0 0.0
    %132 = vmatprep.mubr.f32.mxu0 0.0
    %133 = vmatmul.mubr.f32.gmra.mrb[0].mxu0 %v57
    %v134 = vpop.f32.mrb[0].mxu0
    %v135 = vadd.f32 %v38, %v134
    %v136 = vpop.f32.mrb[0].mxu0
    %v137 = vadd.f32 %v38, %v136
    %138 = vmatprep.mubr.f32.mxu0 0.0
    %139 = vmatmul.mubr.f32.gmra.mrb[0].mxu0 %v60
    %v140 = vpop.f32.mrb[0].mxu0
    %v141 = vadd.f32 %v43, %v140
    %v142 = vpop.f32.mrb[0].mxu0
    %v143 = vadd.f32 %v43, %v142
    %144 = vmatprep.mubr.f32.mxu0 0.0
    %145 = vmatmul.mubr.f32.gmra.mrb[0].mxu0 %v63
    %v146 = vpop.f32.mrb[0].mxu0
    %v147 = vadd.f32 %v48, %v146
    %v148 = vpop.f32.mrb[0].mxu0
    %v149 = vadd.f32 %v48, %v148
    %150 = vmatprep.mubr.f32.mxu0 0.0
    %151 = vmatmul.mubr.f32.gmra.mrb[0].mxu0 %v66
    %v152 = vpop.f32.mrb[0].mxu0
    %v153 = vadd.f32 %v53, %v152
    %v154 = vpop.f32.mrb[0].mxu0
    %v155 = vadd.f32 %v53, %v154
    %156 = vdwg.mxu0
    %157 = vxpose.xlu0.b32.start [1/16] %v135, 128
    %158 = vxpose.xlu0.b32.cont [2/16] %v141, 128
    %159 = vxpose.xlu0.b32.cont [3/16] 0.0, 128
    %160 = vxpose.xlu0.b32.cont [4/16] 0.0, 128
    %161 = vxpose.xlu0.b32.cont [5/16] 0.0, 128
    %162 = vxpose.xlu0.b32.cont [6/16] 0.0, 128
    %163 = vxpose.xlu0.b32.cont [7/16] 0.0, 128
    %164 = vxpose.xlu0.b32.cont [8/16] 0.0, 128
    %165 = vxpose.xlu0.b32.cont [9/16] 0.0, 128
    %166 = vxpose.xlu0.b32.cont [10/16] 0.0, 128
    %167 = vxpose.xlu0.b32.cont [11/16] 0.0, 128
    %168 = vxpose.xlu0.b32.cont [12/16] 0.0, 128
    %169 = vxpose.xlu0.b32.cont [13/16] 0.0, 128
    %170 = vxpose.xlu0.b32.cont [14/16] 0.0, 128
    %171 = vxpose.xlu0.b32.cont [15/16] 0.0, 128
    %172 = vxpose.xlu0.b32.end [16/16] 0.0, 128
    %v173 = vpop.trf.xlu0
    %v174 = vpop.trf.xlu0
    %v175 = vpop.trf.xlu0
    %v176 = vpop.trf.xlu0
    %v177 = vpop.trf.xlu0
    %v178 = vpop.trf.xlu0
    %v179 = vpop.trf.xlu0
    %v180 = vpop.trf.xlu0
    %v181 = vpop.trf.xlu0
    %v182 = vpop.trf.xlu0
    %v183 = vpop.trf.xlu0
    %v184 = vpop.trf.xlu0
    %v185 = vpop.trf.xlu0
    %v186 = vpop.trf.xlu0
    %v187 = vpop.trf.xlu0
    %v188 = vpop.trf.xlu0
    %189 = vxpose.xlu0.b32.start [1/16] %v137, 128
    %190 = vxpose.xlu0.b32.cont [2/16] %v143, 128
    %191 = vxpose.xlu0.b32.cont [3/16] 0.0, 128
    %192 = vxpose.xlu0.b32.cont [4/16] 0.0, 128
    %193 = vxpose.xlu0.b32.cont [5/16] 0.0, 128
    %194 = vxpose.xlu0.b32.cont [6/16] 0.0, 128
    %195 = vxpose.xlu0.b32.cont [7/16] 0.0, 128
    %196 = vxpose.xlu0.b32.cont [8/16] 0.0, 128
    %197 = vxpose.xlu0.b32.cont [9/16] 0.0, 128
    %198 = vxpose.xlu0.b32.cont [10/16] 0.0, 128
    %199 = vxpose.xlu0.b32.cont [11/16] 0.0, 128
    %200 = vxpose.xlu0.b32.cont [12/16] 0.0, 128
    %201 = vxpose.xlu0.b32.cont [13/16] 0.0, 128
    %202 = vxpose.xlu0.b32.cont [14/16] 0.0, 128
    %203 = vxpose.xlu0.b32.cont [15/16] 0.0, 128
    %204 = vxpose.xlu0.b32.end [16/16] 0.0, 128
    %v205 = vpop.trf.xlu0
    %v206 = vpop.trf.xlu0
    %v207 = vpop.trf.xlu0
    %v208 = vpop.trf.xlu0
    %v209 = vpop.trf.xlu0
    %v210 = vpop.trf.xlu0
    %v211 = vpop.trf.xlu0
    %v212 = vpop.trf.xlu0
    %v213 = vpop.trf.xlu0
    %v214 = vpop.trf.xlu0
    %v215 = vpop.trf.xlu0
    %v216 = vpop.trf.xlu0
    %v217 = vpop.trf.xlu0
    %v218 = vpop.trf.xlu0
    %v219 = vpop.trf.xlu0
    %v220 = vpop.trf.xlu0
    %v222 = vsel %vm55, %v173, 0
    %v225 = vsel %vm55, %v174, 0
    %v228 = vsel %vm55, %v175, 0
    %v231 = vsel %vm55, %v176, 0
    %v234 = vsel %vm55, %v177, 0
    %v237 = vsel %vm55, %v178, 0
    %v240 = vsel %vm55, %v179, 0
    %v243 = vsel %vm55, %v180, 0
    %v246 = vsel %vm55, %v181, 0
    %v249 = vsel %vm55, %v182, 0
    %v252 = vsel %vm55, %v183, 0
    %v255 = vsel %vm55, %v184, 0
    %v258 = vsel %vm55, %v185, 0
    %v261 = vsel %vm55, %v186, 0
    %v264 = vsel %vm55, %v187, 0
    %v267 = vsel %vm55, %v188, 0
    %v270 = vsel %vm55, %v205, 0
    %v273 = vsel %vm55, %v206, 0
    %v276 = vsel %vm55, %v207, 0
    %v279 = vsel %vm55, %v208, 0
    %v282 = vsel %vm55, %v209, 0
    %v285 = vsel %vm55, %v210, 0
    %v288 = vsel %vm55, %v211, 0
    %v291 = vsel %vm55, %v212, 0
    %v294 = vsel %vm55, %v213, 0
    %v297 = vsel %vm55, %v214, 0
    %v300 = vsel %vm55, %v215, 0
    %v303 = vsel %vm55, %v216, 0
    %v306 = vsel %vm55, %v217, 0
    %v309 = vsel %vm55, %v218, 0
    %v312 = vsel %vm55, %v219, 0
    %v315 = vsel %vm55, %v220, 0
    %317 = vmatprep.subr.mxu0 %v32
    %318 = vmatpush1.msra.mxu0 %v31
    %319 = vmatprep.subr.mxu0 %v34
    %320 = vmatpush1.msra.mxu0 %v33
    %321 = vmatprep.subr.mxu0 0.0
    %322 = vmatpush1.msra.mxu0 0.0
    %323 = vmatprep.subr.mxu0 0.0
    %324 = vmatpush1.msra.mxu0 0.0
    %325 = vmatprep.subr.mxu0 0.0
    %326 = vmatpush1.msra.mxu0 0.0
    %327 = vmatprep.subr.mxu0 0.0
    %328 = vmatpush1.msra.mxu0 0.0
    %329 = vmatprep.subr.mxu0 0.0
    %330 = vmatpush1.msra.mxu0 0.0
    %331 = vmatprep.subr.mxu0 0.0
    %332 = vmatpush1.msra.mxu0 0.0
    %333 = vmatprep.subr.mxu0 0.0
    %334 = vmatpush1.msra.mxu0 0.0
    %335 = vmatprep.subr.mxu0 0.0
    %336 = vmatpush1.msra.mxu0 0.0
    %337 = vmatprep.subr.mxu0 0.0
    %338 = vmatpush1.msra.mxu0 0.0
    %339 = vmatprep.subr.mxu0 0.0
    %340 = vmatpush1.msra.mxu0 0.0
    %341 = vmatprep.subr.mxu0 0.0
    %342 = vmatpush1.msra.mxu0 0.0
    %343 = vmatprep.subr.mxu0 0.0
    %344 = vmatpush1.msra.mxu0 0.0
    %345 = vmatprep.subr.mxu0 0.0
    %346 = vmatpush1.msra.mxu0 0.0
    %347 = vmatprep.subr.mxu0 0.0
    %348 = vmatpush1.msra.mxu0 0.0
    %349 = vmatprep.subr.mxu0 0.0
    %350 = vmatpush1.msra.mxu0 0.0
    %351 = vmatprep.subr.mxu0 0.0
    %352 = vmatpush1.msra.mxu0 0.0
    %353 = vmatprep.subr.mxu0 0.0
    %354 = vmatpush1.msra.mxu0 0.0
    %355 = vmatprep.subr.mxu0 0.0
    %356 = vmatpush1.msra.mxu0 0.0
    %357 = vmatprep.subr.mxu0 0.0
    %358 = vmatpush1.msra.mxu0 0.0
    %359 = vmatprep.subr.mxu0 0.0
    %360 = vmatpush1.msra.mxu0 0.0
    %361 = vmatprep.subr.mxu0 0.0
    %362 = vmatpush1.msra.mxu0 0.0
    %363 = vmatprep.subr.mxu0 0.0
    %364 = vmatpush1.msra.mxu0 0.0
    %365 = vmatprep.subr.mxu0 0.0
    %366 = vmatpush1.msra.mxu0 0.0
    %367 = vmatprep.subr.mxu0 0.0
    %368 = vmatpush1.msra.mxu0 0.0
    %369 = vmatprep.subr.mxu0 0.0
    %370 = vmatpush1.msra.mxu0 0.0
    %371 = vmatprep.subr.mxu0 0.0
    %372 = vmatpush1.msra.mxu0 0.0
    %373 = vmatprep.subr.mxu0 0.0
    %374 = vmatpush1.msra.mxu0 0.0
    %375 = vmatprep.subr.mxu0 0.0
    %376 = vmatpush1.msra.mxu0 0.0
    %377 = vmatprep.subr.mxu0 0.0
    %378 = vmatpush1.msra.mxu0 0.0
    %379 = vmatprep.subr.mxu0 0.0
    %380 = vmatpush1.msra.mxu0 0.0
    %381 = vmatprep.mubr.f32.mxu0 0.0
    %382 = vmatmul.mubr.f32.gmra.mrb[0].mxu0 %v222
    %v383 = vpop.f32.mrb[0].mxu0
    %v384 = vadd.f32 0.0, %v383
    %v385 = vpop.f32.mrb[0].mxu0
    %v386 = vadd.f32 0.0, %v385
    %387 = vmatprep.mubr.f32.mxu0 0.0
    %388 = vmatmul.mubr.f32.gmra.mrb[0].mxu0 %v225
    %v389 = vpop.f32.mrb[0].mxu0
    %v390 = vadd.f32 0.0, %v389
    %v391 = vpop.f32.mrb[0].mxu0
    %v392 = vadd.f32 0.0, %v391
    %393 = vmatprep.mubr.f32.mxu0 0.0
    %394 = vmatmul.mubr.f32.gmra.mrb[0].mxu0 %v228
    %v395 = vpop.f32.mrb[0].mxu0
    %v396 = vadd.f32 0.0, %v395
    %v397 = vpop.f32.mrb[0].mxu0
    %v398 = vadd.f32 0.0, %v397
    %399 = vmatprep.mubr.f32.mxu0 0.0
    %400 = vmatmul.mubr.f32.gmra.mrb[0].mxu0 %v231
    %v401 = vpop.f32.mrb[0].mxu0
    %v402 = vadd.f32 0.0, %v401
    %v403 = vpop.f32.mrb[0].mxu0
    %v404 = vadd.f32 0.0, %v403
    %405 = vmatprep.mubr.f32.mxu0 0.0
    %406 = vmatmul.mubr.f32.gmra.mrb[0].mxu0 %v234
    %v407 = vpop.f32.mrb[0].mxu0
    %v408 = vadd.f32 0.0, %v407
    %v409 = vpop.f32.mrb[0].mxu0
    %v410 = vadd.f32 0.0, %v409
    %411 = vmatprep.mubr.f32.mxu0 0.0
    %412 = vmatmul.mubr.f32.gmra.mrb[0].mxu0 %v237
    %v413 = vpop.f32.mrb[0].mxu0
    %v414 = vadd.f32 0.0, %v413
    %v415 = vpop.f32.mrb[0].mxu0
    %v416 = vadd.f32 0.0, %v415
    %417 = vmatprep.mubr.f32.mxu0 0.0
    %418 = vmatmul.mubr.f32.gmra.mrb[0].mxu0 %v240
    %v419 = vpop.f32.mrb[0].mxu0
    %v420 = vadd.f32 0.0, %v419
    %v421 = vpop.f32.mrb[0].mxu0
    %v422 = vadd.f32 0.0, %v421
    %423 = vmatprep.mubr.f32.mxu0 0.0
    %424 = vmatmul.mubr.f32.gmra.mrb[0].mxu0 %v243
    %v425 = vpop.f32.mrb[0].mxu0
    %v426 = vadd.f32 0.0, %v425
    %v427 = vpop.f32.mrb[0].mxu0
    %v428 = vadd.f32 0.0, %v427
    %429 = vmatprep.mubr.f32.mxu0 0.0
    %430 = vmatmul.mubr.f32.gmra.mrb[0].mxu0 %v246
    %v431 = vpop.f32.mrb[0].mxu0
    %v432 = vadd.f32 0.0, %v431
    %v433 = vpop.f32.mrb[0].mxu0
    %v434 = vadd.f32 0.0, %v433
    %435 = vmatprep.mubr.f32.mxu0 0.0
    %436 = vmatmul.mubr.f32.gmra.mrb[0].mxu0 %v249
    %v437 = vpop.f32.mrb[0].mxu0
    %v438 = vadd.f32 0.0, %v437
    %v439 = vpop.f32.mrb[0].mxu0
    %v440 = vadd.f32 0.0, %v439
    %441 = vmatprep.mubr.f32.mxu0 0.0
    %442 = vmatmul.mubr.f32.gmra.mrb[0].mxu0 %v252
    %v443 = vpop.f32.mrb[0].mxu0
    %v444 = vadd.f32 0.0, %v443
    %v445 = vpop.f32.mrb[0].mxu0
    %v446 = vadd.f32 0.0, %v445
    %447 = vmatprep.mubr.f32.mxu0 0.0
    %448 = vmatmul.mubr.f32.gmra.mrb[0].mxu0 %v255
    %v449 = vpop.f32.mrb[0].mxu0
    %v450 = vadd.f32 0.0, %v449
    %v451 = vpop.f32.mrb[0].mxu0
    %v452 = vadd.f32 0.0, %v451
    %453 = vmatprep.mubr.f32.mxu0 0.0
    %454 = vmatmul.mubr.f32.gmra.mrb[0].mxu0 %v258
    %v455 = vpop.f32.mrb[0].mxu0
    %v456 = vadd.f32 0.0, %v455
    %v457 = vpop.f32.mrb[0].mxu0
    %v458 = vadd.f32 0.0, %v457
    %459 = vmatprep.mubr.f32.mxu0 0.0
    %460 = vmatmul.mubr.f32.gmra.mrb[0].mxu0 %v261
    %v461 = vpop.f32.mrb[0].mxu0
    %v462 = vadd.f32 0.0, %v461
    %v463 = vpop.f32.mrb[0].mxu0
    %v464 = vadd.f32 0.0, %v463
    %465 = vmatprep.mubr.f32.mxu0 0.0
    %466 = vmatmul.mubr.f32.gmra.mrb[0].mxu0 %v264
    %v467 = vpop.f32.mrb[0].mxu0
    %v468 = vadd.f32 0.0, %v467
    %v469 = vpop.f32.mrb[0].mxu0
    %v470 = vadd.f32 0.0, %v469
    %471 = vmatprep.mubr.f32.mxu0 0.0
    %472 = vmatmul.mubr.f32.gmra.mrb[0].mxu0 %v267
    %v473 = vpop.f32.mrb[0].mxu0
    %v474 = vadd.f32 0.0, %v473
    %v475 = vpop.f32.mrb[0].mxu0
    %v476 = vadd.f32 0.0, %v475
    %477 = vmatprep.mubr.f32.mxu0 0.0
    %478 = vmatmul.mubr.f32.gmra.mrb[0].mxu0 %v270
    %v479 = vpop.f32.mrb[0].mxu0
    %v480 = vadd.f32 0.0, %v479
    %v481 = vpop.f32.mrb[0].mxu0
    %v482 = vadd.f32 0.0, %v481
    %483 = vmatprep.mubr.f32.mxu0 0.0
    %484 = vmatmul.mubr.f32.gmra.mrb[0].mxu0 %v273
    %v485 = vpop.f32.mrb[0].mxu0
    %v486 = vadd.f32 0.0, %v485
    %v487 = vpop.f32.mrb[0].mxu0
    %v488 = vadd.f32 0.0, %v487
    %489 = vmatprep.mubr.f32.mxu0 0.0
    %490 = vmatmul.mubr.f32.gmra.mrb[0].mxu0 %v276
    %v491 = vpop.f32.mrb[0].mxu0
    %v492 = vadd.f32 0.0, %v491
    %v493 = vpop.f32.mrb[0].mxu0
    %v494 = vadd.f32 0.0, %v493
    %495 = vmatprep.mubr.f32.mxu0 0.0
    %496 = vmatmul.mubr.f32.gmra.mrb[0].mxu0 %v279
    %v497 = vpop.f32.mrb[0].mxu0
    %v498 = vadd.f32 0.0, %v497
    %v499 = vpop.f32.mrb[0].mxu0
    %v500 = vadd.f32 0.0, %v499
    %501 = vmatprep.mubr.f32.mxu0 0.0
    %502 = vmatmul.mubr.f32.gmra.mrb[0].mxu0 %v282
    %v503 = vpop.f32.mrb[0].mxu0
    %v504 = vadd.f32 0.0, %v503
    %v505 = vpop.f32.mrb[0].mxu0
    %v506 = vadd.f32 0.0, %v505
    %507 = vmatprep.mubr.f32.mxu0 0.0
    %508 = vmatmul.mubr.f32.gmra.mrb[0].mxu0 %v285
    %v509 = vpop.f32.mrb[0].mxu0
    %v510 = vadd.f32 0.0, %v509
    %v511 = vpop.f32.mrb[0].mxu0
    %v512 = vadd.f32 0.0, %v511
    %513 = vmatprep.mubr.f32.mxu0 0.0
    %514 = vmatmul.mubr.f32.gmra.mrb[0].mxu0 %v288
    %v515 = vpop.f32.mrb[0].mxu0
    %v516 = vadd.f32 0.0, %v515
    %v517 = vpop.f32.mrb[0].mxu0
    %v518 = vadd.f32 0.0, %v517
    %519 = vmatprep.mubr.f32.mxu0 0.0
    %520 = vmatmul.mubr.f32.gmra.mrb[0].mxu0 %v291
    %v521 = vpop.f32.mrb[0].mxu0
    %v522 = vadd.f32 0.0, %v521
    %v523 = vpop.f32.mrb[0].mxu0
    %v524 = vadd.f32 0.0, %v523
    %525 = vmatprep.mubr.f32.mxu0 0.0
    %526 = vmatmul.mubr.f32.gmra.mrb[0].mxu0 %v294
    %v527 = vpop.f32.mrb[0].mxu0
    %v528 = vadd.f32 0.0, %v527
    %v529 = vpop.f32.mrb[0].mxu0
    %v530 = vadd.f32 0.0, %v529
    %531 = vmatprep.mubr.f32.mxu0 0.0
    %532 = vmatmul.mubr.f32.gmra.mrb[0].mxu0 %v297
    %v533 = vpop.f32.mrb[0].mxu0
    %v534 = vadd.f32 0.0, %v533
    %v535 = vpop.f32.mrb[0].mxu0
    %v536 = vadd.f32 0.0, %v535
    %537 = vmatprep.mubr.f32.mxu0 0.0
    %538 = vmatmul.mubr.f32.gmra.mrb[0].mxu0 %v300
    %v539 = vpop.f32.mrb[0].mxu0
    %v540 = vadd.f32 0.0, %v539
    %v541 = vpop.f32.mrb[0].mxu0
    %v542 = vadd.f32 0.0, %v541
    %543 = vmatprep.mubr.f32.mxu0 0.0
    %544 = vmatmul.mubr.f32.gmra.mrb[0].mxu0 %v303
    %v545 = vpop.f32.mrb[0].mxu0
    %v546 = vadd.f32 0.0, %v545
    %v547 = vpop.f32.mrb[0].mxu0
    %v548 = vadd.f32 0.0, %v547
    %549 = vmatprep.mubr.f32.mxu0 0.0
    %550 = vmatmul.mubr.f32.gmra.mrb[0].mxu0 %v306
    %v551 = vpop.f32.mrb[0].mxu0
    %v552 = vadd.f32 0.0, %v551
    %v553 = vpop.f32.mrb[0].mxu0
    %v554 = vadd.f32 0.0, %v553
    %555 = vmatprep.mubr.f32.mxu0 0.0
    %556 = vmatmul.mubr.f32.gmra.mrb[0].mxu0 %v309
    %v557 = vpop.f32.mrb[0].mxu0
    %v558 = vadd.f32 0.0, %v557
    %v559 = vpop.f32.mrb[0].mxu0
    %v560 = vadd.f32 0.0, %v559
    %561 = vmatprep.mubr.f32.mxu0 0.0
    %562 = vmatmul.mubr.f32.gmra.mrb[0].mxu0 %v312
    %v563 = vpop.f32.mrb[0].mxu0
    %v564 = vadd.f32 0.0, %v563
    %v565 = vpop.f32.mrb[0].mxu0
    %v566 = vadd.f32 0.0, %v565
    %567 = vmatprep.mubr.f32.mxu0 0.0
    %568 = vmatmul.mubr.f32.gmra.mrb[0].mxu0 %v315
    %v569 = vpop.f32.mrb[0].mxu0
    %v570 = vadd.f32 0.0, %v569
    %v571 = vpop.f32.mrb[0].mxu0
    %v572 = vadd.f32 0.0, %v571
    %573 = vdwg.mxu0
    %v574 = vmax.f32 %v384, %v386
    %575 = vmax.xlane.f32.xlu0 %v574
    %v576 = vpop.xlane.xlu0 %575
    %v577 = vmax.f32 %v390, %v392
    %578 = vmax.xlane.f32.xlu0 %v577
    %v579 = vpop.xlane.xlu0 %578
    %v580 = vmax.f32 %v396, %v398
    %581 = vmax.xlane.f32.xlu0 %v580
    %v582 = vpop.xlane.xlu0 %581
    %v583 = vmax.f32 %v402, %v404
    %584 = vmax.xlane.f32.xlu0 %v583
    %v585 = vpop.xlane.xlu0 %584
    %v586 = vmax.f32 %v408, %v410
    %587 = vmax.xlane.f32.xlu0 %v586
    %v588 = vpop.xlane.xlu0 %587
    %v589 = vmax.f32 %v414, %v416
    %590 = vmax.xlane.f32.xlu0 %v589
    %v591 = vpop.xlane.xlu0 %590
    %v592 = vmax.f32 %v420, %v422
    %593 = vmax.xlane.f32.xlu0 %v592
    %v594 = vpop.xlane.xlu0 %593
    %v595 = vmax.f32 %v426, %v428
    %596 = vmax.xlane.f32.xlu0 %v595
    %v597 = vpop.xlane.xlu0 %596
    %v598 = vmax.f32 %v432, %v434
    %599 = vmax.xlane.f32.xlu0 %v598
    %v600 = vpop.xlane.xlu0 %599
    %v601 = vmax.f32 %v438, %v440
    %602 = vmax.xlane.f32.xlu0 %v601
    %v603 = vpop.xlane.xlu0 %602
    %v604 = vmax.f32 %v444, %v446
    %605 = vmax.xlane.f32.xlu0 %v604
    %v606 = vpop.xlane.xlu0 %605
    %v607 = vmax.f32 %v450, %v452
    %608 = vmax.xlane.f32.xlu0 %v607
    %v609 = vpop.xlane.xlu0 %608
    %v610 = vmax.f32 %v456, %v458
    %611 = vmax.xlane.f32.xlu0 %v610
    %v612 = vpop.xlane.xlu0 %611
    %v613 = vmax.f32 %v462, %v464
    %614 = vmax.xlane.f32.xlu0 %v613
    %v615 = vpop.xlane.xlu0 %614
    %v616 = vmax.f32 %v468, %v470
    %617 = vmax.xlane.f32.xlu0 %v616
    %v618 = vpop.xlane.xlu0 %617
    %v619 = vmax.f32 %v474, %v476
    %620 = vmax.xlane.f32.xlu0 %v619
    %v621 = vpop.xlane.xlu0 %620
    %v622 = vmax.f32 %v480, %v482
    %623 = vmax.xlane.f32.xlu0 %v622
    %v624 = vpop.xlane.xlu0 %623
    %v625 = vmax.f32 %v486, %v488
    %626 = vmax.xlane.f32.xlu0 %v625
    %v627 = vpop.xlane.xlu0 %626
    %v628 = vmax.f32 %v492, %v494
    %629 = vmax.xlane.f32.xlu0 %v628
    %v630 = vpop.xlane.xlu0 %629
    %v631 = vmax.f32 %v498, %v500
    %632 = vmax.xlane.f32.xlu0 %v631
    %v633 = vpop.xlane.xlu0 %632
    %v634 = vmax.f32 %v504, %v506
    %635 = vmax.xlane.f32.xlu0 %v634
    %v636 = vpop.xlane.xlu0 %635
    %v637 = vmax.f32 %v510, %v512
    %638 = vmax.xlane.f32.xlu0 %v637
    %v639 = vpop.xlane.xlu0 %638
    %v640 = vmax.f32 %v516, %v518
    %641 = vmax.xlane.f32.xlu0 %v640
    %v642 = vpop.xlane.xlu0 %641
    %v643 = vmax.f32 %v522, %v524
    %644 = vmax.xlane.f32.xlu0 %v643
    %v645 = vpop.xlane.xlu0 %644
    %v646 = vmax.f32 %v528, %v530
    %647 = vmax.xlane.f32.xlu0 %v646
    %v648 = vpop.xlane.xlu0 %647
    %v649 = vmax.f32 %v534, %v536
    %650 = vmax.xlane.f32.xlu0 %v649
    %v651 = vpop.xlane.xlu0 %650
    %v652 = vmax.f32 %v540, %v542
    %653 = vmax.xlane.f32.xlu0 %v652
    %v654 = vpop.xlane.xlu0 %653
    %v655 = vmax.f32 %v546, %v548
    %656 = vmax.xlane.f32.xlu0 %v655
    %v657 = vpop.xlane.xlu0 %656
    %v658 = vmax.f32 %v552, %v554
    %659 = vmax.xlane.f32.xlu0 %v658
    %v660 = vpop.xlane.xlu0 %659
    %v661 = vmax.f32 %v558, %v560
    %662 = vmax.xlane.f32.xlu0 %v661
    %v663 = vpop.xlane.xlu0 %662
    %v664 = vmax.f32 %v564, %v566
    %665 = vmax.xlane.f32.xlu0 %v664
    %v666 = vpop.xlane.xlu0 %665
    %v667 = vmax.f32 %v570, %v572
    %668 = vmax.xlane.f32.xlu0 %v667
    %v669 = vpop.xlane.xlu0 %668
    %v670 = vsub.f32 %v384, %v576
    %v671 = vsub.f32 %v386, %v576
    %v672 = vsub.f32 %v390, %v579
    %v673 = vsub.f32 %v392, %v579
    %v674 = vsub.f32 %v396, %v582
    %v675 = vsub.f32 %v398, %v582
    %v676 = vsub.f32 %v402, %v585
    %v677 = vsub.f32 %v404, %v585
    %v678 = vsub.f32 %v408, %v588
    %v679 = vsub.f32 %v410, %v588
    %v680 = vsub.f32 %v414, %v591
    %v681 = vsub.f32 %v416, %v591
    %v682 = vsub.f32 %v420, %v594
    %v683 = vsub.f32 %v422, %v594
    %v684 = vsub.f32 %v426, %v597
    %v685 = vsub.f32 %v428, %v597
    %v686 = vsub.f32 %v432, %v600
    %v687 = vsub.f32 %v434, %v600
    %v688 = vsub.f32 %v438, %v603
    %v689 = vsub.f32 %v440, %v603
    %v690 = vsub.f32 %v444, %v606
    %v691 = vsub.f32 %v446, %v606
    %v692 = vsub.f32 %v450, %v609
    %v693 = vsub.f32 %v452, %v609
    %v694 = vsub.f32 %v456, %v612
    %v695 = vsub.f32 %v458, %v612
    %v696 = vsub.f32 %v462, %v615
    %v697 = vsub.f32 %v464, %v615
    %v698 = vsub.f32 %v468, %v618
    %v699 = vsub.f32 %v470, %v618
    %v700 = vsub.f32 %v474, %v621
    %v701 = vsub.f32 %v476, %v621
    %v702 = vsub.f32 %v480, %v624
    %v703 = vsub.f32 %v482, %v624
    %v704 = vsub.f32 %v486, %v627
    %v705 = vsub.f32 %v488, %v627
    %v706 = vsub.f32 %v492, %v630
    %v707 = vsub.f32 %v494, %v630
    %v708 = vsub.f32 %v498, %v633
    %v709 = vsub.f32 %v500, %v633
    %v710 = vsub.f32 %v504, %v636
    %v711 = vsub.f32 %v506, %v636
    %v712 = vsub.f32 %v510, %v639
    %v713 = vsub.f32 %v512, %v639
    %v714 = vsub.f32 %v516, %v642
    %v715 = vsub.f32 %v518, %v642
    %v716 = vsub.f32 %v522, %v645
    %v717 = vsub.f32 %v524, %v645
    %v718 = vsub.f32 %v528, %v648
    %v719 = vsub.f32 %v530, %v648
    %v720 = vsub.f32 %v534, %v651
    %v721 = vsub.f32 %v536, %v651
    %v722 = vsub.f32 %v540, %v654
    %v723 = vsub.f32 %v542, %v654
    %v724 = vsub.f32 %v546, %v657
    %v725 = vsub.f32 %v548, %v657
    %v726 = vsub.f32 %v552, %v660
    %v727 = vsub.f32 %v554, %v660
    %v728 = vsub.f32 %v558, %v663
    %v729 = vsub.f32 %v560, %v663
    %v730 = vsub.f32 %v564, %v666
    %v731 = vsub.f32 %v566, %v666
    %v732 = vsub.f32 %v570, %v669
    %v733 = vsub.f32 %v572, %v669
    %v734 = vmul.f32 %v670, 1.442695
    %v735 = vpow.pop %v734
    %v736 = vmul.f32 %v671, 1.442695
    %v737 = vpow.pop %v736
    %v738 = vmul.f32 %v672, 1.442695
    %v739 = vpow.pop %v738
    %v740 = vmul.f32 %v673, 1.442695
    %v741 = vpow.pop %v740
    %v742 = vmul.f32 %v674, 1.442695
    %v743 = vpow.pop %v742
    %v744 = vmul.f32 %v675, 1.442695
    %v745 = vpow.pop %v744
    %v746 = vmul.f32 %v676, 1.442695
    %v747 = vpow.pop %v746
    %v748 = vmul.f32 %v677, 1.442695
    %v749 = vpow.pop %v748
    %v750 = vmul.f32 %v678, 1.442695
    %v751 = vpow.pop %v750
    %v752 = vmul.f32 %v679, 1.442695
    %v753 = vpow.pop %v752
    %v754 = vmul.f32 %v680, 1.442695
    %v755 = vpow.pop %v754
    %v756 = vmul.f32 %v681, 1.442695
    %v757 = vpow.pop %v756
    %v758 = vmul.f32 %v682, 1.442695
    %v759 = vpow.pop %v758
    %v760 = vmul.f32 %v683, 1.442695
    %v761 = vpow.pop %v760
    %v762 = vmul.f32 %v684, 1.442695
    %v763 = vpow.pop %v762
    %v764 = vmul.f32 %v685, 1.442695
    %v765 = vpow.pop %v764
    %v766 = vmul.f32 %v686, 1.442695
    %v767 = vpow.pop %v766
    %v768 = vmul.f32 %v687, 1.442695
    %v769 = vpow.pop %v768
    %v770 = vmul.f32 %v688, 1.442695
    %v771 = vpow.pop %v770
    %v772 = vmul.f32 %v689, 1.442695
    %v773 = vpow.pop %v772
    %v774 = vmul.f32 %v690, 1.442695
    %v775 = vpow.pop %v774
    %v776 = vmul.f32 %v691, 1.442695
    %v777 = vpow.pop %v776
    %v778 = vmul.f32 %v692, 1.442695
    %v779 = vpow.pop %v778
    %v780 = vmul.f32 %v693, 1.442695
    %v781 = vpow.pop %v780
    %v782 = vmul.f32 %v694, 1.442695
    %v783 = vpow.pop %v782
    %v784 = vmul.f32 %v695, 1.442695
    %v785 = vpow.pop %v784
    %v786 = vmul.f32 %v696, 1.442695
    %v787 = vpow.pop %v786
    %v788 = vmul.f32 %v697, 1.442695
    %v789 = vpow.pop %v788
    %v790 = vmul.f32 %v698, 1.442695
    %v791 = vpow.pop %v790
    %v792 = vmul.f32 %v699, 1.442695
    %v793 = vpow.pop %v792
    %v794 = vmul.f32 %v700, 1.442695
    %v795 = vpow.pop %v794
    %v796 = vmul.f32 %v701, 1.442695
    %v797 = vpow.pop %v796
    %v798 = vmul.f32 %v702, 1.442695
    %v799 = vpow.pop %v798
    %v800 = vmul.f32 %v703, 1.442695
    %v801 = vpow.pop %v800
    %v802 = vmul.f32 %v704, 1.442695
    %v803 = vpow.pop %v802
    %v804 = vmul.f32 %v705, 1.442695
    %v805 = vpow.pop %v804
    %v806 = vmul.f32 %v706, 1.442695
    %v807 = vpow.pop %v806
    %v808 = vmul.f32 %v707, 1.442695
    %v809 = vpow.pop %v808
    %v810 = vmul.f32 %v708, 1.442695
    %v811 = vpow.pop %v810
    %v812 = vmul.f32 %v709, 1.442695
    %v813 = vpow.pop %v812
    %v814 = vmul.f32 %v710, 1.442695
    %v815 = vpow.pop %v814
    %v816 = vmul.f32 %v711, 1.442695
    %v817 = vpow.pop %v816
    %v818 = vmul.f32 %v712, 1.442695
    %v819 = vpow.pop %v818
    %v820 = vmul.f32 %v713, 1.442695
    %v821 = vpow.pop %v820
    %v822 = vmul.f32 %v714, 1.442695
    %v823 = vpow.pop %v822
    %v824 = vmul.f32 %v715, 1.442695
    %v825 = vpow.pop %v824
    %v826 = vmul.f32 %v716, 1.442695
    %v827 = vpow.pop %v826
    %v828 = vmul.f32 %v717, 1.442695
    %v829 = vpow.pop %v828
    %v830 = vmul.f32 %v718, 1.442695
    %v831 = vpow.pop %v830
    %v832 = vmul.f32 %v719, 1.442695
    %v833 = vpow.pop %v832
    %v834 = vmul.f32 %v720, 1.442695
    %v835 = vpow.pop %v834
    %v836 = vmul.f32 %v721, 1.442695
    %v837 = vpow.pop %v836
    %v838 = vmul.f32 %v722, 1.442695
    %v839 = vpow.pop %v838
    %v840 = vmul.f32 %v723, 1.442695
    %v841 = vpow.pop %v840
    %v842 = vmul.f32 %v724, 1.442695
    %v843 = vpow.pop %v842
    %v844 = vmul.f32 %v725, 1.442695
    %v845 = vpow.pop %v844
    %v846 = vmul.f32 %v726, 1.442695
    %v847 = vpow.pop %v846
    %v848 = vmul.f32 %v727, 1.442695
    %v849 = vpow.pop %v848
    %v850 = vmul.f32 %v728, 1.442695
    %v851 = vpow.pop %v850
    %v852 = vmul.f32 %v729, 1.442695
    %v853 = vpow.pop %v852
    %v854 = vmul.f32 %v730, 1.442695
    %v855 = vpow.pop %v854
    %v856 = vmul.f32 %v731, 1.442695
    %v857 = vpow.pop %v856
    %v858 = vmul.f32 %v732, 1.442695
    %v859 = vpow.pop %v858
    %v860 = vmul.f32 %v733, 1.442695
    %v861 = vpow.pop %v860
    %v862 = vadd.f32 %v735, %v737
    %863 = vadd.xlane.f32.xlu0 %v862
    %v864 = vpop.xlane.xlu0 %863
    %v865 = vadd.f32 %v739, %v741
    %866 = vadd.xlane.f32.xlu0 %v865
    %v867 = vpop.xlane.xlu0 %866
    %v868 = vadd.f32 %v743, %v745
    %869 = vadd.xlane.f32.xlu0 %v868
    %v870 = vpop.xlane.xlu0 %869
    %v871 = vadd.f32 %v747, %v749
    %872 = vadd.xlane.f32.xlu0 %v871
    %v873 = vpop.xlane.xlu0 %872
    %v874 = vadd.f32 %v751, %v753
    %875 = vadd.xlane.f32.xlu0 %v874
    %v876 = vpop.xlane.xlu0 %875
    %v877 = vadd.f32 %v755, %v757
    %878 = vadd.xlane.f32.xlu0 %v877
    %v879 = vpop.xlane.xlu0 %878
    %v880 = vadd.f32 %v759, %v761
    %881 = vadd.xlane.f32.xlu0 %v880
    %v882 = vpop.xlane.xlu0 %881
    %v883 = vadd.f32 %v763, %v765
    %884 = vadd.xlane.f32.xlu0 %v883
    %v885 = vpop.xlane.xlu0 %884
    %v886 = vadd.f32 %v767, %v769
    %887 = vadd.xlane.f32.xlu0 %v886
    %v888 = vpop.xlane.xlu0 %887
    %v889 = vadd.f32 %v771, %v773
    %890 = vadd.xlane.f32.xlu0 %v889
    %v891 = vpop.xlane.xlu0 %890
    %v892 = vadd.f32 %v775, %v777
    %893 = vadd.xlane.f32.xlu0 %v892
    %v894 = vpop.xlane.xlu0 %893
    %v895 = vadd.f32 %v779, %v781
    %896 = vadd.xlane.f32.xlu0 %v895
    %v897 = vpop.xlane.xlu0 %896
    %v898 = vadd.f32 %v783, %v785
    %899 = vadd.xlane.f32.xlu0 %v898
    %v900 = vpop.xlane.xlu0 %899
    %v901 = vadd.f32 %v787, %v789
    %902 = vadd.xlane.f32.xlu0 %v901
    %v903 = vpop.xlane.xlu0 %902
    %v904 = vadd.f32 %v791, %v793
    %905 = vadd.xlane.f32.xlu0 %v904
    %v906 = vpop.xlane.xlu0 %905
    %v907 = vadd.f32 %v795, %v797
    %908 = vadd.xlane.f32.xlu0 %v907
    %v909 = vpop.xlane.xlu0 %908
    %v910 = vadd.f32 %v799, %v801
    %911 = vadd.xlane.f32.xlu0 %v910
    %v912 = vpop.xlane.xlu0 %911
    %v913 = vadd.f32 %v803, %v805
    %914 = vadd.xlane.f32.xlu0 %v913
    %v915 = vpop.xlane.xlu0 %914
    %v916 = vadd.f32 %v807, %v809
    %917 = vadd.xlane.f32.xlu0 %v916
    %v918 = vpop.xlane.xlu0 %917
    %v919 = vadd.f32 %v811, %v813
    %920 = vadd.xlane.f32.xlu0 %v919
    %v921 = vpop.xlane.xlu0 %920
    %v922 = vadd.f32 %v815, %v817
    %923 = vadd.xlane.f32.xlu0 %v922
    %v924 = vpop.xlane.xlu0 %923
    %v925 = vadd.f32 %v819, %v821
    %926 = vadd.xlane.f32.xlu0 %v925
    %v927 = vpop.xlane.xlu0 %926
    %v928 = vadd.f32 %v823, %v825
    %929 = vadd.xlane.f32.xlu0 %v928
    %v930 = vpop.xlane.xlu0 %929
    %v931 = vadd.f32 %v827, %v829
    %932 = vadd.xlane.f32.xlu0 %v931
    %v933 = vpop.xlane.xlu0 %932
    %v934 = vadd.f32 %v831, %v833
    %935 = vadd.xlane.f32.xlu0 %v934
    %v936 = vpop.xlane.xlu0 %935
    %v937 = vadd.f32 %v835, %v837
    %938 = vadd.xlane.f32.xlu0 %v937
    %v939 = vpop.xlane.xlu0 %938
    %v940 = vadd.f32 %v839, %v841
    %941 = vadd.xlane.f32.xlu0 %v940
    %v942 = vpop.xlane.xlu0 %941
    %v943 = vadd.f32 %v843, %v845
    %944 = vadd.xlane.f32.xlu0 %v943
    %v945 = vpop.xlane.xlu0 %944
    %v946 = vadd.f32 %v847, %v849
    %947 = vadd.xlane.f32.xlu0 %v946
    %v948 = vpop.xlane.xlu0 %947
    %v949 = vadd.f32 %v851, %v853
    %950 = vadd.xlane.f32.xlu0 %v949
    %v951 = vpop.xlane.xlu0 %950
    %v952 = vadd.f32 %v855, %v857
    %953 = vadd.xlane.f32.xlu0 %v952
    %v954 = vpop.xlane.xlu0 %953
    %v955 = vadd.f32 %v859, %v861
    %956 = vadd.xlane.f32.xlu0 %v955
    %v957 = vpop.xlane.xlu0 %956
    %v958 = vrcp.pop %v864
    %v959 = vrcp.pop %v867
    %v960 = vrcp.pop %v870
    %v961 = vrcp.pop %v873
    %v962 = vrcp.pop %v876
    %v963 = vrcp.pop %v879
    %v964 = vrcp.pop %v882
    %v965 = vrcp.pop %v885
    %v966 = vrcp.pop %v888
    %v967 = vrcp.pop %v891
    %v968 = vrcp.pop %v894
    %v969 = vrcp.pop %v897
    %v970 = vrcp.pop %v900
    %v971 = vrcp.pop %v903
    %v972 = vrcp.pop %v906
    %v973 = vrcp.pop %v909
    %v974 = vrcp.pop %v912
    %v975 = vrcp.pop %v915
    %v976 = vrcp.pop %v918
    %v977 = vrcp.pop %v921
    %v978 = vrcp.pop %v924
    %v979 = vrcp.pop %v927
    %v980 = vrcp.pop %v930
    %v981 = vrcp.pop %v933
    %v982 = vrcp.pop %v936
    %v983 = vrcp.pop %v939
    %v984 = vrcp.pop %v942
    %v985 = vrcp.pop %v945
    %v986 = vrcp.pop %v948
    %v987 = vrcp.pop %v951
    %v988 = vrcp.pop %v954
    %v989 = vrcp.pop %v957
    %v990 = vmul.f32 %v864, %v958
    %v991 = vmul.f32 %v867, %v959
    %v992 = vmul.f32 %v870, %v960
    %v993 = vmul.f32 %v873, %v961
    %v994 = vmul.f32 %v876, %v962
    %v995 = vmul.f32 %v879, %v963
    %v996 = vmul.f32 %v882, %v964
    %v997 = vmul.f32 %v885, %v965
    %v998 = vmul.f32 %v888, %v966
    %v999 = vmul.f32 %v891, %v967
    %v1000 = vmul.f32 %v894, %v968
    %v1001 = vmul.f32 %v897, %v969
    %v1002 = vmul.f32 %v900, %v970
    %v1003 = vmul.f32 %v903, %v971
    %v1004 = vmul.f32 %v906, %v972
    %v1005 = vmul.f32 %v909, %v973
    %v1006 = vmul.f32 %v912, %v974
    %v1007 = vmul.f32 %v915, %v975
    %v1008 = vmul.f32 %v918, %v976
    %v1009 = vmul.f32 %v921, %v977
    %v1010 = vmul.f32 %v924, %v978
    %v1011 = vmul.f32 %v927, %v979
    %v1012 = vmul.f32 %v930, %v980
    %v1013 = vmul.f32 %v933, %v981
    %v1014 = vmul.f32 %v936, %v982
    %v1015 = vmul.f32 %v939, %v983
    %v1016 = vmul.f32 %v942, %v984
    %v1017 = vmul.f32 %v945, %v985
    %v1018 = vmul.f32 %v948, %v986
    %v1019 = vmul.f32 %v951, %v987
    %v1020 = vmul.f32 %v954, %v988
    %v1021 = vmul.f32 %v957, %v989
    %v1022 = vsub.f32 2.0, %v990
    %v1023 = vsub.f32 2.0, %v991
    %v1024 = vsub.f32 2.0, %v992
    %v1025 = vsub.f32 2.0, %v993
    %v1026 = vsub.f32 2.0, %v994
    %v1027 = vsub.f32 2.0, %v995
    %v1028 = vsub.f32 2.0, %v996
    %v1029 = vsub.f32 2.0, %v997
    %v1030 = vsub.f32 2.0, %v998
    %v1031 = vsub.f32 2.0, %v999
    %v1032 = vsub.f32 2.0, %v1000
    %v1033 = vsub.f32 2.0, %v1001
    %v1034 = vsub.f32 2.0, %v1002
    %v1035 = vsub.f32 2.0, %v1003
    %v1036 = vsub.f32 2.0, %v1004
    %v1037 = vsub.f32 2.0, %v1005
    %v1038 = vsub.f32 2.0, %v1006
    %v1039 = vsub.f32 2.0, %v1007
    %v1040 = vsub.f32 2.0, %v1008
    %v1041 = vsub.f32 2.0, %v1009
    %v1042 = vsub.f32 2.0, %v1010
    %v1043 = vsub.f32 2.0, %v1011
    %v1044 = vsub.f32 2.0, %v1012
    %v1045 = vsub.f32 2.0, %v1013
    %v1046 = vsub.f32 2.0, %v1014
    %v1047 = vsub.f32 2.0, %v1015
    %v1048 = vsub.f32 2.0, %v1016
    %v1049 = vsub.f32 2.0, %v1017
    %v1050 = vsub.f32 2.0, %v1018
    %v1051 = vsub.f32 2.0, %v1019
    %v1052 = vsub.f32 2.0, %v1020
    %v1053 = vsub.f32 2.0, %v1021
    %v1054 = vmul.f32 %v958, %v1022
    %v1055 = vmul.f32 %v959, %v1023
    %v1056 = vmul.f32 %v960, %v1024
    %v1057 = vmul.f32 %v961, %v1025
    %v1058 = vmul.f32 %v962, %v1026
    %v1059 = vmul.f32 %v963, %v1027
    %v1060 = vmul.f32 %v964, %v1028
    %v1061 = vmul.f32 %v965, %v1029
    %v1062 = vmul.f32 %v966, %v1030
    %v1063 = vmul.f32 %v967, %v1031
    %v1064 = vmul.f32 %v968, %v1032
    %v1065 = vmul.f32 %v969, %v1033
    %v1066 = vmul.f32 %v970, %v1034
    %v1067 = vmul.f32 %v971, %v1035
    %v1068 = vmul.f32 %v972, %v1036
    %v1069 = vmul.f32 %v973, %v1037
    %v1070 = vmul.f32 %v974, %v1038
    %v1071 = vmul.f32 %v975, %v1039
    %v1072 = vmul.f32 %v976, %v1040
    %v1073 = vmul.f32 %v977, %v1041
    %v1074 = vmul.f32 %v978, %v1042
    %v1075 = vmul.f32 %v979, %v1043
    %v1076 = vmul.f32 %v980, %v1044
    %v1077 = vmul.f32 %v981, %v1045
    %v1078 = vmul.f32 %v982, %v1046
    %v1079 = vmul.f32 %v983, %v1047
    %v1080 = vmul.f32 %v984, %v1048
    %v1081 = vmul.f32 %v985, %v1049
    %v1082 = vmul.f32 %v986, %v1050
    %v1083 = vmul.f32 %v987, %v1051
    %v1084 = vmul.f32 %v988, %v1052
    %v1085 = vmul.f32 %v989, %v1053
    %v1086 = vmul.f32 %v735, %v1054
    %v1087 = vmul.f32 %v737, %v1054
    %v1088 = vmul.f32 %v739, %v1055
    %v1089 = vmul.f32 %v741, %v1055
    %v1090 = vmul.f32 %v743, %v1056
    %v1091 = vmul.f32 %v745, %v1056
    %v1092 = vmul.f32 %v747, %v1057
    %v1093 = vmul.f32 %v749, %v1057
    %v1094 = vmul.f32 %v751, %v1058
    %v1095 = vmul.f32 %v753, %v1058
    %v1096 = vmul.f32 %v755, %v1059
    %v1097 = vmul.f32 %v757, %v1059
    %v1098 = vmul.f32 %v759, %v1060
    %v1099 = vmul.f32 %v761, %v1060
    %v1100 = vmul.f32 %v763, %v1061
    %v1101 = vmul.f32 %v765, %v1061
    %v1102 = vmul.f32 %v767, %v1062
    %v1103 = vmul.f32 %v769, %v1062
    %v1104 = vmul.f32 %v771, %v1063
    %v1105 = vmul.f32 %v773, %v1063
    %v1106 = vmul.f32 %v775, %v1064
    %v1107 = vmul.f32 %v777, %v1064
    %v1108 = vmul.f32 %v779, %v1065
    %v1109 = vmul.f32 %v781, %v1065
    %v1110 = vmul.f32 %v783, %v1066
    %v1111 = vmul.f32 %v785, %v1066
    %v1112 = vmul.f32 %v787, %v1067
    %v1113 = vmul.f32 %v789, %v1067
    %v1114 = vmul.f32 %v791, %v1068
    %v1115 = vmul.f32 %v793, %v1068
    %v1116 = vmul.f32 %v795, %v1069
    %v1117 = vmul.f32 %v797, %v1069
    %v1118 = vmul.f32 %v799, %v1070
    %v1119 = vmul.f32 %v801, %v1070
    %v1120 = vmul.f32 %v803, %v1071
    %v1121 = vmul.f32 %v805, %v1071
    %v1122 = vmul.f32 %v807, %v1072
    %v1123 = vmul.f32 %v809, %v1072
    %v1124 = vmul.f32 %v811, %v1073
    %v1125 = vmul.f32 %v813, %v1073
    %v1126 = vmul.f32 %v815, %v1074
    %v1127 = vmul.f32 %v817, %v1074
    %v1128 = vmul.f32 %v819, %v1075
    %v1129 = vmul.f32 %v821, %v1075
    %v1130 = vmul.f32 %v823, %v1076
    %v1131 = vmul.f32 %v825, %v1076
    %v1132 = vmul.f32 %v827, %v1077
    %v1133 = vmul.f32 %v829, %v1077
    %v1134 = vmul.f32 %v831, %v1078
    %v1135 = vmul.f32 %v833, %v1078
    %v1136 = vmul.f32 %v835, %v1079
    %v1137 = vmul.f32 %v837, %v1079
    %v1138 = vmul.f32 %v839, %v1080
    %v1139 = vmul.f32 %v841, %v1080
    %v1140 = vmul.f32 %v843, %v1081
    %v1141 = vmul.f32 %v845, %v1081
    %v1142 = vmul.f32 %v847, %v1082
    %v1143 = vmul.f32 %v849, %v1082
    %v1144 = vmul.f32 %v851, %v1083
    %v1145 = vmul.f32 %v853, %v1083
    %v1146 = vmul.f32 %v855, %v1084
    %v1147 = vmul.f32 %v857, %v1084
    %v1148 = vmul.f32 %v859, %v1085
    %v1149 = vmul.f32 %v861, %v1085
    %1150 = vmatprep.subr.mxu0 %v1087
    %1151 = vmatpush1.xpose.msra.mxu0 %v1086
    %1152 = vmatprep.subr.mxu0 %v1089
    %1153 = vmatpush1.xpose.msra.mxu0 %v1088
    %1154 = vmatprep.subr.mxu0 %v1091
    %1155 = vmatpush1.xpose.msra.mxu0 %v1090
    %1156 = vmatprep.subr.mxu0 %v1093
    %1157 = vmatpush1.xpose.msra.mxu0 %v1092
    %1158 = vmatprep.subr.mxu0 %v1095
    %1159 = vmatpush1.xpose.msra.mxu0 %v1094
    %1160 = vmatprep.subr.mxu0 %v1097
    %1161 = vmatpush1.xpose.msra.mxu0 %v1096
    %1162 = vmatprep.subr.mxu0 %v1099
    %1163 = vmatpush1.xpose.msra.mxu0 %v1098
    %1164 = vmatprep.subr.mxu0 %v1101
    %1165 = vmatpush1.xpose.msra.mxu0 %v1100
    %1166 = vmatprep.subr.mxu0 %v1103
    %1167 = vmatpush1.xpose.msra.mxu0 %v1102
    %1168 = vmatprep.subr.mxu0 %v1105
    %1169 = vmatpush1.xpose.msra.mxu0 %v1104
    %1170 = vmatprep.subr.mxu0 %v1107
    %1171 = vmatpush1.xpose.msra.mxu0 %v1106
    %1172 = vmatprep.subr.mxu0 %v1109
    %1173 = vmatpush1.xpose.msra.mxu0 %v1108
    %1174 = vmatprep.subr.mxu0 %v1111
    %1175 = vmatpush1.xpose.msra.mxu0 %v1110
    %1176 = vmatprep.subr.mxu0 %v1113
    %1177 = vmatpush1.xpose.msra.mxu0 %v1112
    %1178 = vmatprep.subr.mxu0 %v1115
    %1179 = vmatpush1.xpose.msra.mxu0 %v1114
    %1180 = vmatprep.subr.mxu0 %v1117
    %1181 = vmatpush1.xpose.msra.mxu0 %v1116
    %1182 = vmatprep.subr.mxu0 %v1119
    %1183 = vmatpush1.xpose.msra.mxu0 %v1118
    %1184 = vmatprep.subr.mxu0 %v1121
    %1185 = vmatpush1.xpose.msra.mxu0 %v1120
    %1186 = vmatprep.subr.mxu0 %v1123
    %1187 = vmatpush1.xpose.msra.mxu0 %v1122
    %1188 = vmatprep.subr.mxu0 %v1125
    %1189 = vmatpush1.xpose.msra.mxu0 %v1124
    %1190 = vmatprep.subr.mxu0 %v1127
    %1191 = vmatpush1.xpose.msra.mxu0 %v1126
    %1192 = vmatprep.subr.mxu0 %v1129
    %1193 = vmatpush1.xpose.msra.mxu0 %v1128
    %1194 = vmatprep.subr.mxu0 %v1131
    %1195 = vmatpush1.xpose.msra.mxu0 %v1130
    %1196 = vmatprep.subr.mxu0 %v1133
    %1197 = vmatpush1.xpose.msra.mxu0 %v1132
    %1198 = vmatprep.subr.mxu0 %v1135
    %1199 = vmatpush1.xpose.msra.mxu0 %v1134
    %1200 = vmatprep.subr.mxu0 %v1137
    %1201 = vmatpush1.xpose.msra.mxu0 %v1136
    %1202 = vmatprep.subr.mxu0 %v1139
    %1203 = vmatpush1.xpose.msra.mxu0 %v1138
    %1204 = vmatprep.subr.mxu0 %v1141
    %1205 = vmatpush1.xpose.msra.mxu0 %v1140
    %1206 = vmatprep.subr.mxu0 %v1143
    %1207 = vmatpush1.xpose.msra.mxu0 %v1142
    %1208 = vmatprep.subr.mxu0 %v1145
    %1209 = vmatpush1.xpose.msra.mxu0 %v1144
    %1210 = vmatprep.subr.mxu0 %v1147
    %1211 = vmatpush1.xpose.msra.mxu0 %v1146
    %1212 = vmatprep.subr.mxu0 %v1149
    %1213 = vmatpush1.xpose.msra.mxu0 %v1148
    %1214 = vmatprep.mubr.f32.mxu0 %v149
    %1215 = vmatmul.mubr.f32.gmra.mrb[0].mxu0 %v147
    %v1216 = vpop.f32.mrb[0].mxu0
    %v1217 = vadd.f32 0.0, %v1216
    %v1218 = vpop.f32.mrb[0].mxu0
    %v1219 = vadd.f32 0.0, %v1218
    %1220 = vmatprep.mubr.f32.mxu0 %v155
    %1221 = vmatmul.mubr.f32.gmra.mrb[0].mxu0 %v153
    %v1222 = vpop.f32.mrb[0].mxu0
    %v1223 = vadd.f32 0.0, %v1222
    %v1224 = vpop.f32.mrb[0].mxu0
    %v1225 = vadd.f32 0.0, %v1224
    %1226 = vdwg.mxu0
    %v1227 = vstv %s30
    %v1228 = vmul.f32 %v1227, %v1217
    %v1229 = vmul.f32 %v1227, %v1219
    %v1230 = vmul.f32 %v1227, %v1223
    %v1231 = vmul.f32 %v1227, %v1225
    %v1232 = vadd.f32 %v1228, %v31
    %v1233 = vadd.f32 %v1229, %v32
    %v1234 = vadd.f32 %v1230, %v33
    %v1235 = vadd.f32 %v1231, %v34
    %1236 = vst [vmem:[#allocation3] sm:$0xff] %v1232
    %1237 = vst [vmem:[#allocation3 + $0x8] sm:$0xff] %v1233
    %1238 = vst [vmem:[#allocation3 + $0x10] sm:$0xff] %v1234
    %1239 = vst [vmem:[#allocation3 + $0x18] sm:$0xff] %v1235
    %1240 = vst [vmem:[#allocation5] sm:$0xff] %v1086
    %1241 = vst [vmem:[#allocation5 + $0x8] sm:$0xff] %v1087
    %1242 = vst [vmem:[#allocation5 + $0x10] sm:$0xff] %v1088
    %1243 = vst [vmem:[#allocation5 + $0x18] sm:$0xff] %v1089
    %1244 = vst [vmem:[#allocation5 + $0x20] sm:$0xff] %v1090
    %1245 = vst [vmem:[#allocation5 + $0x28] sm:$0xff] %v1091
    %1246 = vst [vmem:[#allocation5 + $0x30] sm:$0xff] %v1092
    %1247 = vst [vmem:[#allocation5 + $0x38] sm:$0xff] %v1093
    %1248 = vst [vmem:[#allocation5 + $0x40] sm:$0xff] %v1094
    %1249 = vst [vmem:[#allocation5 + $0x48] sm:$0xff] %v1095
    %1250 = vst [vmem:[#allocation5 + $0x50] sm:$0xff] %v1096
    %1251 = vst [vmem:[#allocation5 + $0x58] sm:$0xff] %v1097
    %1252 = vst [vmem:[#allocation5 + $0x60] sm:$0xff] %v1098
    %1253 = vst [vmem:[#allocation5 + $0x68] sm:$0xff] %v1099
    %1254 = vst [vmem:[#allocation5 + $0x70] sm:$0xff] %v1100
    %1255 = vst [vmem:[#allocation5 + $0x78] sm:$0xff] %v1101
    %1256 = vst [vmem:[#allocation5 + $0x80] sm:$0xff] %v1102
    %1257 = vst [vmem:[#allocation5 + $0x88] sm:$0xff] %v1103
    %1258 = vst [vmem:[#allocation5 + $0x90] sm:$0xff] %v1104
    %1259 = vst [vmem:[#allocation5 + $0x98] sm:$0xff] %v1105
    %1260 = vst [vmem:[#allocation5 + $0xa0] sm:$0xff] %v1106
    %1261 = vst [vmem:[#allocation5 + $0xa8] sm:$0xff] %v1107
    %1262 = vst [vmem:[#allocation5 + $0xb0] sm:$0xff] %v1108
    %1263 = vst [vmem:[#allocation5 + $0xb8] sm:$0xff] %v1109
    %1264 = vst [vmem:[#allocation5 + $0xc0] sm:$0xff] %v1110
    %1265 = vst [vmem:[#allocation5 + $0xc8] sm:$0xff] %v1111
    %1266 = vst [vmem:[#allocation5 + $0xd0] sm:$0xff] %v1112
    %1267 = vst [vmem:[#allocation5 + $0xd8] sm:$0xff] %v1113
    %1268 = vst [vmem:[#allocation5 + $0xe0] sm:$0xff] %v1114
    %1269 = vst [vmem:[#allocation5 + $0xe8] sm:$0xff] %v1115
    %1270 = vst [vmem:[#allocation5 + $0xf0] sm:$0xff] %v1116
    %1271 = vst [vmem:[#allocation5 + $0xf8] sm:$0xff] %v1117
    %1272 = vst [vmem:[#allocation5 + $0x100] sm:$0xff] %v1118
    %1273 = vst [vmem:[#allocation5 + $0x108] sm:$0xff] %v1119
    %1274 = vst [vmem:[#allocation5 + $0x110] sm:$0xff] %v1120
    %1275 = vst [vmem:[#allocation5 + $0x118] sm:$0xff] %v1121
    %1276 = vst [vmem:[#allocation5 + $0x120] sm:$0xff] %v1122
    %1277 = vst [vmem:[#allocation5 + $0x128] sm:$0xff] %v1123
    %1278 = vst [vmem:[#allocation5 + $0x130] sm:$0xff] %v1124
    %1279 = vst [vmem:[#allocation5 + $0x138] sm:$0xff] %v1125
    %1280 = vst [vmem:[#allocation5 + $0x140] sm:$0xff] %v1126
    %1281 = vst [vmem:[#allocation5 + $0x148] sm:$0xff] %v1127
    %1282 = vst [vmem:[#allocation5 + $0x150] sm:$0xff] %v1128
    %1283 = vst [vmem:[#allocation5 + $0x158] sm:$0xff] %v1129
    %1284 = vst [vmem:[#allocation5 + $0x160] sm:$0xff] %v1130
    %1285 = vst [vmem:[#allocation5 + $0x168] sm:$0xff] %v1131
    %1286 = vst [vmem:[#allocation5 + $0x170] sm:$0xff] %v1132
    %1287 = vst [vmem:[#allocation5 + $0x178] sm:$0xff] %v1133
    %1288 = vst [vmem:[#allocation5 + $0x180] sm:$0xff] %v1134
    %1289 = vst [vmem:[#allocation5 + $0x188] sm:$0xff] %v1135
    %1290 = vst [vmem:[#allocation5 + $0x190] sm:$0xff] %v1136
    %1291 = vst [vmem:[#allocation5 + $0x198] sm:$0xff] %v1137
    %1292 = vst [vmem:[#allocation5 + $0x1a0] sm:$0xff] %v1138
    %1293 = vst [vmem:[#allocation5 + $0x1a8] sm:$0xff] %v1139
    %1294 = vst [vmem:[#allocation5 + $0x1b0] sm:$0xff] %v1140
    %1295 = vst [vmem:[#allocation5 + $0x1b8] sm:$0xff] %v1141
    %1296 = vst [vmem:[#allocation5 + $0x1c0] sm:$0xff] %v1142
    %1297 = vst [vmem:[#allocation5 + $0x1c8] sm:$0xff] %v1143
    %1298 = vst [vmem:[#allocation5 + $0x1d0] sm:$0xff] %v1144
    %1299 = vst [vmem:[#allocation5 + $0x1d8] sm:$0xff] %v1145
    %1300 = vst [vmem:[#allocation5 + $0x1e0] sm:$0xff] %v1146
    %1301 = vst [vmem:[#allocation5 + $0x1e8] sm:$0xff] %v1147
    %1302 = vst [vmem:[#allocation5 + $0x1f0] sm:$0xff] %v1148
    %1303 = vst [vmem:[#allocation5 + $0x1f8] sm:$0xff] %v1149
    %s1304 = scalar_lea.vmem %s0, 32
    %v1305 = vld [vmem:[%s1304] sm:$0xff]
    %v1306 = vld [vmem:[%s1304 + $0x8] sm:$0xff]
    %v1307 = vld [vmem:[%s1304 + $0x10] sm:$0xff]
    %v1308 = vld [vmem:[%s1304 + $0x18] sm:$0xff]
    %1309 = vmatprep.subr.mxu0 %v1306
    %1310 = vmatpush1.msra.mxu0 %v1305
    %1311 = vmatprep.subr.mxu0 %v1308
    %1312 = vmatpush1.msra.mxu0 %v1307
    %1313 = vmatprep.subr.mxu0 0.0
    %1314 = vmatpush1.msra.mxu0 0.0
    %1315 = vmatprep.subr.mxu0 0.0
    %1316 = vmatpush1.msra.mxu0 0.0
    %1317 = vmatprep.subr.mxu0 0.0
    %1318 = vmatpush1.msra.mxu0 0.0
    %1319 = vmatprep.subr.mxu0 0.0
    %1320 = vmatpush1.msra.mxu0 0.0
    %1321 = vmatprep.subr.mxu0 0.0
    %1322 = vmatpush1.msra.mxu0 0.0
    %1323 = vmatprep.subr.mxu0 0.0
    %1324 = vmatpush1.msra.mxu0 0.0
    %1325 = vmatprep.subr.mxu0 0.0
    %1326 = vmatpush1.msra.mxu0 0.0
    %1327 = vmatprep.subr.mxu0 0.0
    %1328 = vmatpush1.msra.mxu0 0.0
    %1329 = vmatprep.subr.mxu0 0.0
    %1330 = vmatpush1.msra.mxu0 0.0
    %1331 = vmatprep.subr.mxu0 0.0
    %1332 = vmatpush1.msra.mxu0 0.0
    %1333 = vmatprep.subr.mxu0 0.0
    %1334 = vmatpush1.msra.mxu0 0.0
    %1335 = vmatprep.subr.mxu0 0.0
    %1336 = vmatpush1.msra.mxu0 0.0
    %1337 = vmatprep.subr.mxu0 0.0
    %1338 = vmatpush1.msra.mxu0 0.0
    %1339 = vmatprep.subr.mxu0 0.0
    %1340 = vmatpush1.msra.mxu0 0.0
    %1341 = vmatprep.subr.mxu0 0.0
    %1342 = vmatpush1.msra.mxu0 0.0
    %1343 = vmatprep.subr.mxu0 0.0
    %1344 = vmatpush1.msra.mxu0 0.0
    %1345 = vmatprep.subr.mxu0 0.0
    %1346 = vmatpush1.msra.mxu0 0.0
    %1347 = vmatprep.subr.mxu0 0.0
    %1348 = vmatpush1.msra.mxu0 0.0
    %1349 = vmatprep.subr.mxu0 0.0
    %1350 = vmatpush1.msra.mxu0 0.0
    %1351 = vmatprep.subr.mxu0 0.0
    %1352 = vmatpush1.msra.mxu0 0.0
    %1353 = vmatprep.subr.mxu0 0.0
    %1354 = vmatpush1.msra.mxu0 0.0
    %1355 = vmatprep.subr.mxu0 0.0
    %1356 = vmatpush1.msra.mxu0 0.0
    %1357 = vmatprep.subr.mxu0 0.0
    %1358 = vmatpush1.msra.mxu0 0.0
    %1359 = vmatprep.subr.mxu0 0.0
    %1360 = vmatpush1.msra.mxu0 0.0
    %1361 = vmatprep.subr.mxu0 0.0
    %1362 = vmatpush1.msra.mxu0 0.0
    %1363 = vmatprep.subr.mxu0 0.0
    %1364 = vmatpush1.msra.mxu0 0.0
    %1365 = vmatprep.subr.mxu0 0.0
    %1366 = vmatpush1.msra.mxu0 0.0
    %1367 = vmatprep.subr.mxu0 0.0
    %1368 = vmatpush1.msra.mxu0 0.0
    %1369 = vmatprep.subr.mxu0 0.0
    %1370 = vmatpush1.msra.mxu0 0.0
    %1371 = vmatprep.subr.mxu0 0.0
    %1372 = vmatpush1.msra.mxu0 0.0
    %1373 = vmatprep.mubr.f32.mxu0 0.0
    %1374 = vmatmul.mubr.f32.gmra.mrb[0].mxu0 %v57
    %v1375 = vpop.f32.mrb[0].mxu0
    %v1376 = vadd.f32 %v38, %v1375
    %v1377 = vpop.f32.mrb[0].mxu0
    %v1378 = vadd.f32 %v38, %v1377
    %1379 = vmatprep.mubr.f32.mxu0 0.0
    %1380 = vmatmul.mubr.f32.gmra.mrb[0].mxu0 %v60
    %v1381 = vpop.f32.mrb[0].mxu0
    %v1382 = vadd.f32 %v43, %v1381
    %v1383 = vpop.f32.mrb[0].mxu0
    %v1384 = vadd.f32 %v43, %v1383
    %1385 = vmatprep.mubr.f32.mxu0 0.0
    %1386 = vmatmul.mubr.f32.gmra.mrb[0].mxu0 %v63
    %v1387 = vpop.f32.mrb[0].mxu0
    %v1388 = vadd.f32 %v48, %v1387
    %v1389 = vpop.f32.mrb[0].mxu0
    %v1390 = vadd.f32 %v48, %v1389
    %1391 = vmatprep.mubr.f32.mxu0 0.0
    %1392 = vmatmul.mubr.f32.gmra.mrb[0].mxu0 %v66
    %v1393 = vpop.f32.mrb[0].mxu0
    %v1394 = vadd.f32 %v53, %v1393
    %v1395 = vpop.f32.mrb[0].mxu0
    %v1396 = vadd.f32 %v53, %v1395
    %1397 = vdwg.mxu0
    %1398 = vxpose.xlu0.b32.start [1/16] %v1376, 128
    %1399 = vxpose.xlu0.b32.cont [2/16] %v1382, 128
    %1400 = vxpose.xlu0.b32.cont [3/16] 0.0, 128
    %1401 = vxpose.xlu0.b32.cont [4/16] 0.0, 128
    %1402 = vxpose.xlu0.b32.cont [5/16] 0.0, 128
    %1403 = vxpose.xlu0.b32.cont [6/16] 0.0, 128
    %1404 = vxpose.xlu0.b32.cont [7/16] 0.0, 128
    %1405 = vxpose.xlu0.b32.cont [8/16] 0.0, 128
    %1406 = vxpose.xlu0.b32.cont [9/16] 0.0, 128
    %1407 = vxpose.xlu0.b32.cont [10/16] 0.0, 128
    %1408 = vxpose.xlu0.b32.cont [11/16] 0.0, 128
    %1409 = vxpose.xlu0.b32.cont [12/16] 0.0, 128
    %1410 = vxpose.xlu0.b32.cont [13/16] 0.0, 128
    %1411 = vxpose.xlu0.b32.cont [14/16] 0.0, 128
    %1412 = vxpose.xlu0.b32.cont [15/16] 0.0, 128
    %1413 = vxpose.xlu0.b32.end [16/16] 0.0, 128
    %v1414 = vpop.trf.xlu0
    %v1415 = vpop.trf.xlu0
    %v1416 = vpop.trf.xlu0
    %v1417 = vpop.trf.xlu0
    %v1418 = vpop.trf.xlu0
    %v1419 = vpop.trf.xlu0
    %v1420 = vpop.trf.xlu0
    %v1421 = vpop.trf.xlu0
    %v1422 = vpop.trf.xlu0
    %v1423 = vpop.trf.xlu0
    %v1424 = vpop.trf.xlu0
    %v1425 = vpop.trf.xlu0
    %v1426 = vpop.trf.xlu0
    %v1427 = vpop.trf.xlu0
    %v1428 = vpop.trf.xlu0
    %v1429 = vpop.trf.xlu0
    %1430 = vxpose.xlu0.b32.start [1/16] %v1378, 128
    %1431 = vxpose.xlu0.b32.cont [2/16] %v1384, 128
    %1432 = vxpose.xlu0.b32.cont [3/16] 0.0, 128
    %1433 = vxpose.xlu0.b32.cont [4/16] 0.0, 128
    %1434 = vxpose.xlu0.b32.cont [5/16] 0.0, 128
    %1435 = vxpose.xlu0.b32.cont [6/16] 0.0, 128
    %1436 = vxpose.xlu0.b32.cont [7/16] 0.0, 128
    %1437 = vxpose.xlu0.b32.cont [8/16] 0.0, 128
    %1438 = vxpose.xlu0.b32.cont [9/16] 0.0, 128
    %1439 = vxpose.xlu0.b32.cont [10/16] 0.0, 128
    %1440 = vxpose.xlu0.b32.cont [11/16] 0.0, 128
    %1441 = vxpose.xlu0.b32.cont [12/16] 0.0, 128
    %1442 = vxpose.xlu0.b32.cont [13/16] 0.0, 128
    %1443 = vxpose.xlu0.b32.cont [14/16] 0.0, 128
    %1444 = vxpose.xlu0.b32.cont [15/16] 0.0, 128
    %1445 = vxpose.xlu0.b32.end [16/16] 0.0, 128
    %v1446 = vpop.trf.xlu0
    %v1447 = vpop.trf.xlu0
    %v1448 = vpop.trf.xlu0
    %v1449 = vpop.trf.xlu0
    %v1450 = vpop.trf.xlu0
    %v1451 = vpop.trf.xlu0
    %v1452 = vpop.trf.xlu0
    %v1453 = vpop.trf.xlu0
    %v1454 = vpop.trf.xlu0
    %v1455 = vpop.trf.xlu0
    %v1456 = vpop.trf.xlu0
    %v1457 = vpop.trf.xlu0
    %v1458 = vpop.trf.xlu0
    %v1459 = vpop.trf.xlu0
    %v1460 = vpop.trf.xlu0
    %v1461 = vpop.trf.xlu0
    %v1463 = vsel %vm55, %v1414, 0
    %v1466 = vsel %vm55, %v1415, 0
    %v1469 = vsel %vm55, %v1416, 0
    %v1472 = vsel %vm55, %v1417, 0
    %v1475 = vsel %vm55, %v1418, 0
    %v1478 = vsel %vm55, %v1419, 0
    %v1481 = vsel %vm55, %v1420, 0
    %v1484 = vsel %vm55, %v1421, 0
    %v1487 = vsel %vm55, %v1422, 0
    %v1490 = vsel %vm55, %v1423, 0
    %v1493 = vsel %vm55, %v1424, 0
    %v1496 = vsel %vm55, %v1425, 0
    %v1499 = vsel %vm55, %v1426, 0
    %v1502 = vsel %vm55, %v1427, 0
    %v1505 = vsel %vm55, %v1428, 0
    %v1508 = vsel %vm55, %v1429, 0
    %v1511 = vsel %vm55, %v1446, 0
    %v1514 = vsel %vm55, %v1447, 0
    %v1517 = vsel %vm55, %v1448, 0
    %v1520 = vsel %vm55, %v1449, 0
    %v1523 = vsel %vm55, %v1450, 0
    %v1526 = vsel %vm55, %v1451, 0
    %v1529 = vsel %vm55, %v1452, 0
    %v1532 = vsel %vm55, %v1453, 0
    %v1535 = vsel %vm55, %v1454, 0
    %v1538 = vsel %vm55, %v1455, 0
    %v1541 = vsel %vm55, %v1456, 0
    %v1544 = vsel %vm55, %v1457, 0
    %v1547 = vsel %vm55, %v1458, 0
    %v1550 = vsel %vm55, %v1459, 0
    %v1553 = vsel %vm55, %v1460, 0
    %v1556 = vsel %vm55, %v1461, 0
    %1558 = vmatprep.subr.mxu0 %v1306
    %1559 = vmatpush1.msra.mxu0 %v1305
    %1560 = vmatprep.subr.mxu0 %v1308
    %1561 = vmatpush1.msra.mxu0 %v1307
    %1562 = vmatprep.subr.mxu0 0.0
    %1563 = vmatpush1.msra.mxu0 0.0
    %1564 = vmatprep.subr.mxu0 0.0
    %1565 = vmatpush1.msra.mxu0 0.0
    %1566 = vmatprep.subr.mxu0 0.0
    %1567 = vmatpush1.msra.mxu0 0.0
    %1568 = vmatprep.subr.mxu0 0.0
    %1569 = vmatpush1.msra.mxu0 0.0
    %1570 = vmatprep.subr.mxu0 0.0
    %1571 = vmatpush1.msra.mxu0 0.0
    %1572 = vmatprep.subr.mxu0 0.0
    %1573 = vmatpush1.msra.mxu0 0.0
    %1574 = vmatprep.subr.mxu0 0.0
    %1575 = vmatpush1.msra.mxu0 0.0
    %1576 = vmatprep.subr.mxu0 0.0
    %1577 = vmatpush1.msra.mxu0 0.0
    %1578 = vmatprep.subr.mxu0 0.0
    %1579 = vmatpush1.msra.mxu0 0.0
    %1580 = vmatprep.subr.mxu0 0.0
    %1581 = vmatpush1.msra.mxu0 0.0
    %1582 = vmatprep.subr.mxu0 0.0
    %1583 = vmatpush1.msra.mxu0 0.0
    %1584 = vmatprep.subr.mxu0 0.0
    %1585 = vmatpush1.msra.mxu0 0.0
    %1586 = vmatprep.subr.mxu0 0.0
    %1587 = vmatpush1.msra.mxu0 0.0
    %1588 = vmatprep.subr.mxu0 0.0
    %1589 = vmatpush1.msra.mxu0 0.0
    %1590 = vmatprep.subr.mxu0 0.0
    %1591 = vmatpush1.msra.mxu0 0.0
    %1592 = vmatprep.subr.mxu0 0.0
    %1593 = vmatpush1.msra.mxu0 0.0
    %1594 = vmatprep.subr.mxu0 0.0
    %1595 = vmatpush1.msra.mxu0 0.0
    %1596 = vmatprep.subr.mxu0 0.0
    %1597 = vmatpush1.msra.mxu0 0.0
    %1598 = vmatprep.subr.mxu0 0.0
    %1599 = vmatpush1.msra.mxu0 0.0
    %1600 = vmatprep.subr.mxu0 0.0
    %1601 = vmatpush1.msra.mxu0 0.0
    %1602 = vmatprep.subr.mxu0 0.0
    %1603 = vmatpush1.msra.mxu0 0.0
    %1604 = vmatprep.subr.mxu0 0.0
    %1605 = vmatpush1.msra.mxu0 0.0
    %1606 = vmatprep.subr.mxu0 0.0
    %1607 = vmatpush1.msra.mxu0 0.0
    %1608 = vmatprep.subr.mxu0 0.0
    %1609 = vmatpush1.msra.mxu0 0.0
    %1610 = vmatprep.subr.mxu0 0.0
    %1611 = vmatpush1.msra.mxu0 0.0
    %1612 = vmatprep.subr.mxu0 0.0
    %1613 = vmatpush1.msra.mxu0 0.0
    %1614 = vmatprep.subr.mxu0 0.0
    %1615 = vmatpush1.msra.mxu0 0.0
    %1616 = vmatprep.subr.mxu0 0.0
    %1617 = vmatpush1.msra.mxu0 0.0
    %1618 = vmatprep.subr.mxu0 0.0
    %1619 = vmatpush1.msra.mxu0 0.0
    %1620 = vmatprep.subr.mxu0 0.0
    %1621 = vmatpush1.msra.mxu0 0.0
    %1622 = vmatprep.mubr.f32.mxu0 0.0
    %1623 = vmatmul.mubr.f32.gmra.mrb[0].mxu0 %v1463
    %v1624 = vpop.f32.mrb[0].mxu0
    %v1625 = vadd.f32 0.0, %v1624
    %v1626 = vpop.f32.mrb[0].mxu0
    %v1627 = vadd.f32 0.0, %v1626
    %1628 = vmatprep.mubr.f32.mxu0 0.0
    %1629 = vmatmul.mubr.f32.gmra.mrb[0].mxu0 %v1466
    %v1630 = vpop.f32.mrb[0].mxu0
    %v1631 = vadd.f32 0.0, %v1630
    %v1632 = vpop.f32.mrb[0].mxu0
    %v1633 = vadd.f32 0.0, %v1632
    %1634 = vmatprep.mubr.f32.mxu0 0.0
    %1635 = vmatmul.mubr.f32.gmra.mrb[0].mxu0 %v1469
    %v1636 = vpop.f32.mrb[0].mxu0
    %v1637 = vadd.f32 0.0, %v1636
    %v1638 = vpop.f32.mrb[0].mxu0
    %v1639 = vadd.f32 0.0, %v1638
    %1640 = vmatprep.mubr.f32.mxu0 0.0
    %1641 = vmatmul.mubr.f32.gmra.mrb[0].mxu0 %v1472
    %v1642 = vpop.f32.mrb[0].mxu0
    %v1643 = vadd.f32 0.0, %v1642
    %v1644 = vpop.f32.mrb[0].mxu0
    %v1645 = vadd.f32 0.0, %v1644
    %1646 = vmatprep.mubr.f32.mxu0 0.0
    %1647 = vmatmul.mubr.f32.gmra.mrb[0].mxu0 %v1475
    %v1648 = vpop.f32.mrb[0].mxu0
    %v1649 = vadd.f32 0.0, %v1648
    %v1650 = vpop.f32.mrb[0].mxu0
    %v1651 = vadd.f32 0.0, %v1650
    %1652 = vmatprep.mubr.f32.mxu0 0.0
    %1653 = vmatmul.mubr.f32.gmra.mrb[0].mxu0 %v1478
    %v1654 = vpop.f32.mrb[0].mxu0
    %v1655 = vadd.f32 0.0, %v1654
    %v1656 = vpop.f32.mrb[0].mxu0
    %v1657 = vadd.f32 0.0, %v1656
    %1658 = vmatprep.mubr.f32.mxu0 0.0
    %1659 = vmatmul.mubr.f32.gmra.mrb[0].mxu0 %v1481
    %v1660 = vpop.f32.mrb[0].mxu0
    %v1661 = vadd.f32 0.0, %v1660
    %v1662 = vpop.f32.mrb[0].mxu0
    %v1663 = vadd.f32 0.0, %v1662
    %1664 = vmatprep.mubr.f32.mxu0 0.0
    %1665 = vmatmul.mubr.f32.gmra.mrb[0].mxu0 %v1484
    %v1666 = vpop.f32.mrb[0].mxu0
    %v1667 = vadd.f32 0.0, %v1666
    %v1668 = vpop.f32.mrb[0].mxu0
    %v1669 = vadd.f32 0.0, %v1668
    %1670 = vmatprep.mubr.f32.mxu0 0.0
    %1671 = vmatmul.mubr.f32.gmra.mrb[0].mxu0 %v1487
    %v1672 = vpop.f32.mrb[0].mxu0
    %v1673 = vadd.f32 0.0, %v1672
    %v1674 = vpop.f32.mrb[0].mxu0
    %v1675 = vadd.f32 0.0, %v1674
    %1676 = vmatprep.mubr.f32.mxu0 0.0
    %1677 = vmatmul.mubr.f32.gmra.mrb[0].mxu0 %v1490
    %v1678 = vpop.f32.mrb[0].mxu0
    %v1679 = vadd.f32 0.0, %v1678
    %v1680 = vpop.f32.mrb[0].mxu0
    %v1681 = vadd.f32 0.0, %v1680
    %1682 = vmatprep.mubr.f32.mxu0 0.0
    %1683 = vmatmul.mubr.f32.gmra.mrb[0].mxu0 %v1493
    %v1684 = vpop.f32.mrb[0].mxu0
    %v1685 = vadd.f32 0.0, %v1684
    %v1686 = vpop.f32.mrb[0].mxu0
    %v1687 = vadd.f32 0.0, %v1686
    %1688 = vmatprep.mubr.f32.mxu0 0.0
    %1689 = vmatmul.mubr.f32.gmra.mrb[0].mxu0 %v1496
    %v1690 = vpop.f32.mrb[0].mxu0
    %v1691 = vadd.f32 0.0, %v1690
    %v1692 = vpop.f32.mrb[0].mxu0
    %v1693 = vadd.f32 0.0, %v1692
    %1694 = vmatprep.mubr.f32.mxu0 0.0
    %1695 = vmatmul.mubr.f32.gmra.mrb[0].mxu0 %v1499
    %v1696 = vpop.f32.mrb[0].mxu0
    %v1697 = vadd.f32 0.0, %v1696
    %v1698 = vpop.f32.mrb[0].mxu0
    %v1699 = vadd.f32 0.0, %v1698
    %1700 = vmatprep.mubr.f32.mxu0 0.0
    %1701 = vmatmul.mubr.f32.gmra.mrb[0].mxu0 %v1502
    %v1702 = vpop.f32.mrb[0].mxu0
    %v1703 = vadd.f32 0.0, %v1702
    %v1704 = vpop.f32.mrb[0].mxu0
    %v1705 = vadd.f32 0.0, %v1704
    %1706 = vmatprep.mubr.f32.mxu0 0.0
    %1707 = vmatmul.mubr.f32.gmra.mrb[0].mxu0 %v1505
    %v1708 = vpop.f32.mrb[0].mxu0
    %v1709 = vadd.f32 0.0, %v1708
    %v1710 = vpop.f32.mrb[0].mxu0
    %v1711 = vadd.f32 0.0, %v1710
    %1712 = vmatprep.mubr.f32.mxu0 0.0
    %1713 = vmatmul.mubr.f32.gmra.mrb[0].mxu0 %v1508
    %v1714 = vpop.f32.mrb[0].mxu0
    %v1715 = vadd.f32 0.0, %v1714
    %v1716 = vpop.f32.mrb[0].mxu0
    %v1717 = vadd.f32 0.0, %v1716
    %1718 = vmatprep.mubr.f32.mxu0 0.0
    %1719 = vmatmul.mubr.f32.gmra.mrb[0].mxu0 %v1511
    %v1720 = vpop.f32.mrb[0].mxu0
    %v1721 = vadd.f32 0.0, %v1720
    %v1722 = vpop.f32.mrb[0].mxu0
    %v1723 = vadd.f32 0.0, %v1722
    %1724 = vmatprep.mubr.f32.mxu0 0.0
    %1725 = vmatmul.mubr.f32.gmra.mrb[0].mxu0 %v1514
    %v1726 = vpop.f32.mrb[0].mxu0
    %v1727 = vadd.f32 0.0, %v1726
    %v1728 = vpop.f32.mrb[0].mxu0
    %v1729 = vadd.f32 0.0, %v1728
    %1730 = vmatprep.mubr.f32.mxu0 0.0
    %1731 = vmatmul.mubr.f32.gmra.mrb[0].mxu0 %v1517
    %v1732 = vpop.f32.mrb[0].mxu0
    %v1733 = vadd.f32 0.0, %v1732
    %v1734 = vpop.f32.mrb[0].mxu0
    %v1735 = vadd.f32 0.0, %v1734
    %1736 = vmatprep.mubr.f32.mxu0 0.0
    %1737 = vmatmul.mubr.f32.gmra.mrb[0].mxu0 %v1520
    %v1738 = vpop.f32.mrb[0].mxu0
    %v1739 = vadd.f32 0.0, %v1738
    %v1740 = vpop.f32.mrb[0].mxu0
    %v1741 = vadd.f32 0.0, %v1740
    %1742 = vmatprep.mubr.f32.mxu0 0.0
    %1743 = vmatmul.mubr.f32.gmra.mrb[0].mxu0 %v1523
    %v1744 = vpop.f32.mrb[0].mxu0
    %v1745 = vadd.f32 0.0, %v1744
    %v1746 = vpop.f32.mrb[0].mxu0
    %v1747 = vadd.f32 0.0, %v1746
    %1748 = vmatprep.mubr.f32.mxu0 0.0
    %1749 = vmatmul.mubr.f32.gmra.mrb[0].mxu0 %v1526
    %v1750 = vpop.f32.mrb[0].mxu0
    %v1751 = vadd.f32 0.0, %v1750
    %v1752 = vpop.f32.mrb[0].mxu0
    %v1753 = vadd.f32 0.0, %v1752
    %1754 = vmatprep.mubr.f32.mxu0 0.0
    %1755 = vmatmul.mubr.f32.gmra.mrb[0].mxu0 %v1529
    %v1756 = vpop.f32.mrb[0].mxu0
    %v1757 = vadd.f32 0.0, %v1756
    %v1758 = vpop.f32.mrb[0].mxu0
    %v1759 = vadd.f32 0.0, %v1758
    %1760 = vmatprep.mubr.f32.mxu0 0.0
    %1761 = vmatmul.mubr.f32.gmra.mrb[0].mxu0 %v1532
    %v1762 = vpop.f32.mrb[0].mxu0
    %v1763 = vadd.f32 0.0, %v1762
    %v1764 = vpop.f32.mrb[0].mxu0
    %v1765 = vadd.f32 0.0, %v1764
    %1766 = vmatprep.mubr.f32.mxu0 0.0
    %1767 = vmatmul.mubr.f32.gmra.mrb[0].mxu0 %v1535
    %v1768 = vpop.f32.mrb[0].mxu0
    %v1769 = vadd.f32 0.0, %v1768
    %v1770 = vpop.f32.mrb[0].mxu0
    %v1771 = vadd.f32 0.0, %v1770
    %1772 = vmatprep.mubr.f32.mxu0 0.0
    %1773 = vmatmul.mubr.f32.gmra.mrb[0].mxu0 %v1538
    %v1774 = vpop.f32.mrb[0].mxu0
    %v1775 = vadd.f32 0.0, %v1774
    %v1776 = vpop.f32.mrb[0].mxu0
    %v1777 = vadd.f32 0.0, %v1776
    %1778 = vmatprep.mubr.f32.mxu0 0.0
    %1779 = vmatmul.mubr.f32.gmra.mrb[0].mxu0 %v1541
    %v1780 = vpop.f32.mrb[0].mxu0
    %v1781 = vadd.f32 0.0, %v1780
    %v1782 = vpop.f32.mrb[0].mxu0
    %v1783 = vadd.f32 0.0, %v1782
    %1784 = vmatprep.mubr.f32.mxu0 0.0
    %1785 = vmatmul.mubr.f32.gmra.mrb[0].mxu0 %v1544
    %v1786 = vpop.f32.mrb[0].mxu0
    %v1787 = vadd.f32 0.0, %v1786
    %v1788 = vpop.f32.mrb[0].mxu0
    %v1789 = vadd.f32 0.0, %v1788
    %1790 = vmatprep.mubr.f32.mxu0 0.0
    %1791 = vmatmul.mubr.f32.gmra.mrb[0].mxu0 %v1547
    %v1792 = vpop.f32.mrb[0].mxu0
    %v1793 = vadd.f32 0.0, %v1792
    %v1794 = vpop.f32.mrb[0].mxu0
    %v1795 = vadd.f32 0.0, %v1794
    %1796 = vmatprep.mubr.f32.mxu0 0.0
    %1797 = vmatmul.mubr.f32.gmra.mrb[0].mxu0 %v1550
    %v1798 = vpop.f32.mrb[0].mxu0
    %v1799 = vadd.f32 0.0, %v1798
    %v1800 = vpop.f32.mrb[0].mxu0
    %v1801 = vadd.f32 0.0, %v1800
    %1802 = vmatprep.mubr.f32.mxu0 0.0
    %1803 = vmatmul.mubr.f32.gmra.mrb[0].mxu0 %v1553
    %v1804 = vpop.f32.mrb[0].mxu0
    %v1805 = vadd.f32 0.0, %v1804
    %v1806 = vpop.f32.mrb[0].mxu0
    %v1807 = vadd.f32 0.0, %v1806
    %1808 = vmatprep.mubr.f32.mxu0 0.0
    %1809 = vmatmul.mubr.f32.gmra.mrb[0].mxu0 %v1556
    %v1810 = vpop.f32.mrb[0].mxu0
    %v1811 = vadd.f32 0.0, %v1810
    %v1812 = vpop.f32.mrb[0].mxu0
    %v1813 = vadd.f32 0.0, %v1812
    %1814 = vdwg.mxu0
    %v1815 = vmax.f32 %v1625, %v1627
    %1816 = vmax.xlane.f32.xlu0 %v1815
    %v1817 = vpop.xlane.xlu0 %1816
    %v1818 = vmax.f32 %v1631, %v1633
    %1819 = vmax.xlane.f32.xlu0 %v1818
    %v1820 = vpop.xlane.xlu0 %1819
    %v1821 = vmax.f32 %v1637, %v1639
    %1822 = vmax.xlane.f32.xlu0 %v1821
    %v1823 = vpop.xlane.xlu0 %1822
    %v1824 = vmax.f32 %v1643, %v1645
    %1825 = vmax.xlane.f32.xlu0 %v1824
    %v1826 = vpop.xlane.xlu0 %1825
    %v1827 = vmax.f32 %v1649, %v1651
    %1828 = vmax.xlane.f32.xlu0 %v1827
    %v1829 = vpop.xlane.xlu0 %1828
    %v1830 = vmax.f32 %v1655, %v1657
    %1831 = vmax.xlane.f32.xlu0 %v1830
    %v1832 = vpop.xlane.xlu0 %1831
    %v1833 = vmax.f32 %v1661, %v1663
    %1834 = vmax.xlane.f32.xlu0 %v1833
    %v1835 = vpop.xlane.xlu0 %1834
    %v1836 = vmax.f32 %v1667, %v1669
    %1837 = vmax.xlane.f32.xlu0 %v1836
    %v1838 = vpop.xlane.xlu0 %1837
    %v1839 = vmax.f32 %v1673, %v1675
    %1840 = vmax.xlane.f32.xlu0 %v1839
    %v1841 = vpop.xlane.xlu0 %1840
    %v1842 = vmax.f32 %v1679, %v1681
    %1843 = vmax.xlane.f32.xlu0 %v1842
    %v1844 = vpop.xlane.xlu0 %1843
    %v1845 = vmax.f32 %v1685, %v1687
    %1846 = vmax.xlane.f32.xlu0 %v1845
    %v1847 = vpop.xlane.xlu0 %1846
    %v1848 = vmax.f32 %v1691, %v1693
    %1849 = vmax.xlane.f32.xlu0 %v1848
    %v1850 = vpop.xlane.xlu0 %1849
    %v1851 = vmax.f32 %v1697, %v1699
    %1852 = vmax.xlane.f32.xlu0 %v1851
    %v1853 = vpop.xlane.xlu0 %1852
    %v1854 = vmax.f32 %v1703, %v1705
    %1855 = vmax.xlane.f32.xlu0 %v1854
    %v1856 = vpop.xlane.xlu0 %1855
    %v1857 = vmax.f32 %v1709, %v1711
    %1858 = vmax.xlane.f32.xlu0 %v1857
    %v1859 = vpop.xlane.xlu0 %1858
    %v1860 = vmax.f32 %v1715, %v1717
    %1861 = vmax.xlane.f32.xlu0 %v1860
    %v1862 = vpop.xlane.xlu0 %1861
    %v1863 = vmax.f32 %v1721, %v1723
    %1864 = vmax.xlane.f32.xlu0 %v1863
    %v1865 = vpop.xlane.xlu0 %1864
    %v1866 = vmax.f32 %v1727, %v1729
    %1867 = vmax.xlane.f32.xlu0 %v1866
    %v1868 = vpop.xlane.xlu0 %1867
    %v1869 = vmax.f32 %v1733, %v1735
    %1870 = vmax.xlane.f32.xlu0 %v1869
    %v1871 = vpop.xlane.xlu0 %1870
    %v1872 = vmax.f32 %v1739, %v1741
    %1873 = vmax.xlane.f32.xlu0 %v1872
    %v1874 = vpop.xlane.xlu0 %1873
    %v1875 = vmax.f32 %v1745, %v1747
    %1876 = vmax.xlane.f32.xlu0 %v1875
    %v1877 = vpop.xlane.xlu0 %1876
    %v1878 = vmax.f32 %v1751, %v1753
    %1879 = vmax.xlane.f32.xlu0 %v1878
    %v1880 = vpop.xlane.xlu0 %1879
    %v1881 = vmax.f32 %v1757, %v1759
    %1882 = vmax.xlane.f32.xlu0 %v1881
    %v1883 = vpop.xlane.xlu0 %1882
    %v1884 = vmax.f32 %v1763, %v1765
    %1885 = vmax.xlane.f32.xlu0 %v1884
    %v1886 = vpop.xlane.xlu0 %1885
    %v1887 = vmax.f32 %v1769, %v1771
    %1888 = vmax.xlane.f32.xlu0 %v1887
    %v1889 = vpop.xlane.xlu0 %1888
    %v1890 = vmax.f32 %v1775, %v1777
    %1891 = vmax.xlane.f32.xlu0 %v1890
    %v1892 = vpop.xlane.xlu0 %1891
    %v1893 = vmax.f32 %v1781, %v1783
    %1894 = vmax.xlane.f32.xlu0 %v1893
    %v1895 = vpop.xlane.xlu0 %1894
    %v1896 = vmax.f32 %v1787, %v1789
    %1897 = vmax.xlane.f32.xlu0 %v1896
    %v1898 = vpop.xlane.xlu0 %1897
    %v1899 = vmax.f32 %v1793, %v1795
    %1900 = vmax.xlane.f32.xlu0 %v1899
    %v1901 = vpop.xlane.xlu0 %1900
    %v1902 = vmax.f32 %v1799, %v1801
    %1903 = vmax.xlane.f32.xlu0 %v1902
    %v1904 = vpop.xlane.xlu0 %1903
    %v1905 = vmax.f32 %v1805, %v1807
    %1906 = vmax.xlane.f32.xlu0 %v1905
    %v1907 = vpop.xlane.xlu0 %1906
    %v1908 = vmax.f32 %v1811, %v1813
    %1909 = vmax.xlane.f32.xlu0 %v1908
    %v1910 = vpop.xlane.xlu0 %1909
    %v1911 = vsub.f32 %v1625, %v1817
    %v1912 = vsub.f32 %v1627, %v1817
    %v1913 = vsub.f32 %v1631, %v1820
    %v1914 = vsub.f32 %v1633, %v1820
    %v1915 = vsub.f32 %v1637, %v1823
    %v1916 = vsub.f32 %v1639, %v1823
    %v1917 = vsub.f32 %v1643, %v1826
    %v1918 = vsub.f32 %v1645, %v1826
    %v1919 = vsub.f32 %v1649, %v1829
    %v1920 = vsub.f32 %v1651, %v1829
    %v1921 = vsub.f32 %v1655, %v1832
    %v1922 = vsub.f32 %v1657, %v1832
    %v1923 = vsub.f32 %v1661, %v1835
    %v1924 = vsub.f32 %v1663, %v1835
    %v1925 = vsub.f32 %v1667, %v1838
    %v1926 = vsub.f32 %v1669, %v1838
    %v1927 = vsub.f32 %v1673, %v1841
    %v1928 = vsub.f32 %v1675, %v1841
    %v1929 = vsub.f32 %v1679, %v1844
    %v1930 = vsub.f32 %v1681, %v1844
    %v1931 = vsub.f32 %v1685, %v1847
    %v1932 = vsub.f32 %v1687, %v1847
    %v1933 = vsub.f32 %v1691, %v1850
    %v1934 = vsub.f32 %v1693, %v1850
    %v1935 = vsub.f32 %v1697, %v1853
    %v1936 = vsub.f32 %v1699, %v1853
    %v1937 = vsub.f32 %v1703, %v1856
    %v1938 = vsub.f32 %v1705, %v1856
    %v1939 = vsub.f32 %v1709, %v1859
    %v1940 = vsub.f32 %v1711, %v1859
    %v1941 = vsub.f32 %v1715, %v1862
    %v1942 = vsub.f32 %v1717, %v1862
    %v1943 = vsub.f32 %v1721, %v1865
    %v1944 = vsub.f32 %v1723, %v1865
    %v1945 = vsub.f32 %v1727, %v1868
    %v1946 = vsub.f32 %v1729, %v1868
    %v1947 = vsub.f32 %v1733, %v1871
    %v1948 = vsub.f32 %v1735, %v1871
    %v1949 = vsub.f32 %v1739, %v1874
    %v1950 = vsub.f32 %v1741, %v1874
    %v1951 = vsub.f32 %v1745, %v1877
    %v1952 = vsub.f32 %v1747, %v1877
    %v1953 = vsub.f32 %v1751, %v1880
    %v1954 = vsub.f32 %v1753, %v1880
    %v1955 = vsub.f32 %v1757, %v1883
    %v1956 = vsub.f32 %v1759, %v1883
    %v1957 = vsub.f32 %v1763, %v1886
    %v1958 = vsub.f32 %v1765, %v1886
    %v1959 = vsub.f32 %v1769, %v1889
    %v1960 = vsub.f32 %v1771, %v1889
    %v1961 = vsub.f32 %v1775, %v1892
    %v1962 = vsub.f32 %v1777, %v1892
    %v1963 = vsub.f32 %v1781, %v1895
    %v1964 = vsub.f32 %v1783, %v1895
    %v1965 = vsub.f32 %v1787, %v1898
    %v1966 = vsub.f32 %v1789, %v1898
    %v1967 = vsub.f32 %v1793, %v1901
    %v1968 = vsub.f32 %v1795, %v1901
    %v1969 = vsub.f32 %v1799, %v1904
    %v1970 = vsub.f32 %v1801, %v1904
    %v1971 = vsub.f32 %v1805, %v1907
    %v1972 = vsub.f32 %v1807, %v1907
    %v1973 = vsub.f32 %v1811, %v1910
    %v1974 = vsub.f32 %v1813, %v1910
    %v1975 = vmul.f32 %v1911, 1.442695
    %v1976 = vpow.pop %v1975
    %v1977 = vmul.f32 %v1912, 1.442695
    %v1978 = vpow.pop %v1977
    %v1979 = vmul.f32 %v1913, 1.442695
    %v1980 = vpow.pop %v1979
    %v1981 = vmul.f32 %v1914, 1.442695
    %v1982 = vpow.pop %v1981
    %v1983 = vmul.f32 %v1915, 1.442695
    %v1984 = vpow.pop %v1983
    %v1985 = vmul.f32 %v1916, 1.442695
    %v1986 = vpow.pop %v1985
    %v1987 = vmul.f32 %v1917, 1.442695
    %v1988 = vpow.pop %v1987
    %v1989 = vmul.f32 %v1918, 1.442695
    %v1990 = vpow.pop %v1989
    %v1991 = vmul.f32 %v1919, 1.442695
    %v1992 = vpow.pop %v1991
    %v1993 = vmul.f32 %v1920, 1.442695
    %v1994 = vpow.pop %v1993
    %v1995 = vmul.f32 %v1921, 1.442695
    %v1996 = vpow.pop %v1995
    %v1997 = vmul.f32 %v1922, 1.442695
    %v1998 = vpow.pop %v1997
    %v1999 = vmul.f32 %v1923, 1.442695
    %v2000 = vpow.pop %v1999
    %v2001 = vmul.f32 %v1924, 1.442695
    %v2002 = vpow.pop %v2001
    %v2003 = vmul.f32 %v1925, 1.442695
    %v2004 = vpow.pop %v2003
    %v2005 = vmul.f32 %v1926, 1.442695
    %v2006 = vpow.pop %v2005
    %v2007 = vmul.f32 %v1927, 1.442695
    %v2008 = vpow.pop %v2007
    %v2009 = vmul.f32 %v1928, 1.442695
    %v2010 = vpow.pop %v2009
    %v2011 = vmul.f32 %v1929, 1.442695
    %v2012 = vpow.pop %v2011
    %v2013 = vmul.f32 %v1930, 1.442695
    %v2014 = vpow.pop %v2013
    %v2015 = vmul.f32 %v1931, 1.442695
    %v2016 = vpow.pop %v2015
    %v2017 = vmul.f32 %v1932, 1.442695
    %v2018 = vpow.pop %v2017
    %v2019 = vmul.f32 %v1933, 1.442695
    %v2020 = vpow.pop %v2019
    %v2021 = vmul.f32 %v1934, 1.442695
    %v2022 = vpow.pop %v2021
    %v2023 = vmul.f32 %v1935, 1.442695
    %v2024 = vpow.pop %v2023
    %v2025 = vmul.f32 %v1936, 1.442695
    %v2026 = vpow.pop %v2025
    %v2027 = vmul.f32 %v1937, 1.442695
    %v2028 = vpow.pop %v2027
    %v2029 = vmul.f32 %v1938, 1.442695
    %v2030 = vpow.pop %v2029
    %v2031 = vmul.f32 %v1939, 1.442695
    %v2032 = vpow.pop %v2031
    %v2033 = vmul.f32 %v1940, 1.442695
    %v2034 = vpow.pop %v2033
    %v2035 = vmul.f32 %v1941, 1.442695
    %v2036 = vpow.pop %v2035
    %v2037 = vmul.f32 %v1942, 1.442695
    %v2038 = vpow.pop %v2037
    %v2039 = vmul.f32 %v1943, 1.442695
    %v2040 = vpow.pop %v2039
    %v2041 = vmul.f32 %v1944, 1.442695
    %v2042 = vpow.pop %v2041
    %v2043 = vmul.f32 %v1945, 1.442695
    %v2044 = vpow.pop %v2043
    %v2045 = vmul.f32 %v1946, 1.442695
    %v2046 = vpow.pop %v2045
    %v2047 = vmul.f32 %v1947, 1.442695
    %v2048 = vpow.pop %v2047
    %v2049 = vmul.f32 %v1948, 1.442695
    %v2050 = vpow.pop %v2049
    %v2051 = vmul.f32 %v1949, 1.442695
    %v2052 = vpow.pop %v2051
    %v2053 = vmul.f32 %v1950, 1.442695
    %v2054 = vpow.pop %v2053
    %v2055 = vmul.f32 %v1951, 1.442695
    %v2056 = vpow.pop %v2055
    %v2057 = vmul.f32 %v1952, 1.442695
    %v2058 = vpow.pop %v2057
    %v2059 = vmul.f32 %v1953, 1.442695
    %v2060 = vpow.pop %v2059
    %v2061 = vmul.f32 %v1954, 1.442695
    %v2062 = vpow.pop %v2061
    %v2063 = vmul.f32 %v1955, 1.442695
    %v2064 = vpow.pop %v2063
    %v2065 = vmul.f32 %v1956, 1.442695
    %v2066 = vpow.pop %v2065
    %v2067 = vmul.f32 %v1957, 1.442695
    %v2068 = vpow.pop %v2067
    %v2069 = vmul.f32 %v1958, 1.442695
    %v2070 = vpow.pop %v2069
    %v2071 = vmul.f32 %v1959, 1.442695
    %v2072 = vpow.pop %v2071
    %v2073 = vmul.f32 %v1960, 1.442695
    %v2074 = vpow.pop %v2073
    %v2075 = vmul.f32 %v1961, 1.442695
    %v2076 = vpow.pop %v2075
    %v2077 = vmul.f32 %v1962, 1.442695
    %v2078 = vpow.pop %v2077
    %v2079 = vmul.f32 %v1963, 1.442695
    %v2080 = vpow.pop %v2079
    %v2081 = vmul.f32 %v1964, 1.442695
    %v2082 = vpow.pop %v2081
    %v2083 = vmul.f32 %v1965, 1.442695
    %v2084 = vpow.pop %v2083
    %v2085 = vmul.f32 %v1966, 1.442695
    %v2086 = vpow.pop %v2085
    %v2087 = vmul.f32 %v1967, 1.442695
    %v2088 = vpow.pop %v2087
    %v2089 = vmul.f32 %v1968, 1.442695
    %v2090 = vpow.pop %v2089
    %v2091 = vmul.f32 %v1969, 1.442695
    %v2092 = vpow.pop %v2091
    %v2093 = vmul.f32 %v1970, 1.442695
    %v2094 = vpow.pop %v2093
    %v2095 = vmul.f32 %v1971, 1.442695
    %v2096 = vpow.pop %v2095
    %v2097 = vmul.f32 %v1972, 1.442695
    %v2098 = vpow.pop %v2097
    %v2099 = vmul.f32 %v1973, 1.442695
    %v2100 = vpow.pop %v2099
    %v2101 = vmul.f32 %v1974, 1.442695
    %v2102 = vpow.pop %v2101
    %v2103 = vadd.f32 %v1976, %v1978
    %2104 = vadd.xlane.f32.xlu0 %v2103
    %v2105 = vpop.xlane.xlu0 %2104
    %v2106 = vadd.f32 %v1980, %v1982
    %2107 = vadd.xlane.f32.xlu0 %v2106
    %v2108 = vpop.xlane.xlu0 %2107
    %v2109 = vadd.f32 %v1984, %v1986
    %2110 = vadd.xlane.f32.xlu0 %v2109
    %v2111 = vpop.xlane.xlu0 %2110
    %v2112 = vadd.f32 %v1988, %v1990
    %2113 = vadd.xlane.f32.xlu0 %v2112
    %v2114 = vpop.xlane.xlu0 %2113
    %v2115 = vadd.f32 %v1992, %v1994
    %2116 = vadd.xlane.f32.xlu0 %v2115
    %v2117 = vpop.xlane.xlu0 %2116
    %v2118 = vadd.f32 %v1996, %v1998
    %2119 = vadd.xlane.f32.xlu0 %v2118
    %v2120 = vpop.xlane.xlu0 %2119
    %v2121 = vadd.f32 %v2000, %v2002
    %2122 = vadd.xlane.f32.xlu0 %v2121
    %v2123 = vpop.xlane.xlu0 %2122
    %v2124 = vadd.f32 %v2004, %v2006
    %2125 = vadd.xlane.f32.xlu0 %v2124
    %v2126 = vpop.xlane.xlu0 %2125
    %v2127 = vadd.f32 %v2008, %v2010
    %2128 = vadd.xlane.f32.xlu0 %v2127
    %v2129 = vpop.xlane.xlu0 %2128
    %v2130 = vadd.f32 %v2012, %v2014
    %2131 = vadd.xlane.f32.xlu0 %v2130
    %v2132 = vpop.xlane.xlu0 %2131
    %v2133 = vadd.f32 %v2016, %v2018
    %2134 = vadd.xlane.f32.xlu0 %v2133
    %v2135 = vpop.xlane.xlu0 %2134
    %v2136 = vadd.f32 %v2020, %v2022
    %2137 = vadd.xlane.f32.xlu0 %v2136
    %v2138 = vpop.xlane.xlu0 %2137
    %v2139 = vadd.f32 %v2024, %v2026
    %2140 = vadd.xlane.f32.xlu0 %v2139
    %v2141 = vpop.xlane.xlu0 %2140
    %v2142 = vadd.f32 %v2028, %v2030
    %2143 = vadd.xlane.f32.xlu0 %v2142
    %v2144 = vpop.xlane.xlu0 %2143
    %v2145 = vadd.f32 %v2032, %v2034
    %2146 = vadd.xlane.f32.xlu0 %v2145
    %v2147 = vpop.xlane.xlu0 %2146
    %v2148 = vadd.f32 %v2036, %v2038
    %2149 = vadd.xlane.f32.xlu0 %v2148
    %v2150 = vpop.xlane.xlu0 %2149
    %v2151 = vadd.f32 %v2040, %v2042
    %2152 = vadd.xlane.f32.xlu0 %v2151
    %v2153 = vpop.xlane.xlu0 %2152
    %v2154 = vadd.f32 %v2044, %v2046
    %2155 = vadd.xlane.f32.xlu0 %v2154
    %v2156 = vpop.xlane.xlu0 %2155
    %v2157 = vadd.f32 %v2048, %v2050
    %2158 = vadd.xlane.f32.xlu0 %v2157
    %v2159 = vpop.xlane.xlu0 %2158
    %v2160 = vadd.f32 %v2052, %v2054
    %2161 = vadd.xlane.f32.xlu0 %v2160
    %v2162 = vpop.xlane.xlu0 %2161
    %v2163 = vadd.f32 %v2056, %v2058
    %2164 = vadd.xlane.f32.xlu0 %v2163
    %v2165 = vpop.xlane.xlu0 %2164
    %v2166 = vadd.f32 %v2060, %v2062
    %2167 = vadd.xlane.f32.xlu0 %v2166
    %v2168 = vpop.xlane.xlu0 %2167
    %v2169 = vadd.f32 %v2064, %v2066
    %2170 = vadd.xlane.f32.xlu0 %v2169
    %v2171 = vpop.xlane.xlu0 %2170
    %v2172 = vadd.f32 %v2068, %v2070
    %2173 = vadd.xlane.f32.xlu0 %v2172
    %v2174 = vpop.xlane.xlu0 %2173
    %v2175 = vadd.f32 %v2072, %v2074
    %2176 = vadd.xlane.f32.xlu0 %v2175
    %v2177 = vpop.xlane.xlu0 %2176
    %v2178 = vadd.f32 %v2076, %v2078
    %2179 = vadd.xlane.f32.xlu0 %v2178
    %v2180 = vpop.xlane.xlu0 %2179
    %v2181 = vadd.f32 %v2080, %v2082
    %2182 = vadd.xlane.f32.xlu0 %v2181
    %v2183 = vpop.xlane.xlu0 %2182
    %v2184 = vadd.f32 %v2084, %v2086
    %2185 = vadd.xlane.f32.xlu0 %v2184
    %v2186 = vpop.xlane.xlu0 %2185
    %v2187 = vadd.f32 %v2088, %v2090
    %2188 = vadd.xlane.f32.xlu0 %v2187
    %v2189 = vpop.xlane.xlu0 %2188
    %v2190 = vadd.f32 %v2092, %v2094
    %2191 = vadd.xlane.f32.xlu0 %v2190
    %v2192 = vpop.xlane.xlu0 %2191
    %v2193 = vadd.f32 %v2096, %v2098
    %2194 = vadd.xlane.f32.xlu0 %v2193
    %v2195 = vpop.xlane.xlu0 %2194
    %v2196 = vadd.f32 %v2100, %v2102
    %2197 = vadd.xlane.f32.xlu0 %v2196
    %v2198 = vpop.xlane.xlu0 %2197
    %v2199 = vrcp.pop %v2105
    %v2200 = vrcp.pop %v2108
    %v2201 = vrcp.pop %v2111
    %v2202 = vrcp.pop %v2114
    %v2203 = vrcp.pop %v2117
    %v2204 = vrcp.pop %v2120
    %v2205 = vrcp.pop %v2123
    %v2206 = vrcp.pop %v2126
    %v2207 = vrcp.pop %v2129
    %v2208 = vrcp.pop %v2132
    %v2209 = vrcp.pop %v2135
    %v2210 = vrcp.pop %v2138
    %v2211 = vrcp.pop %v2141
    %v2212 = vrcp.pop %v2144
    %v2213 = vrcp.pop %v2147
    %v2214 = vrcp.pop %v2150
    %v2215 = vrcp.pop %v2153
    %v2216 = vrcp.pop %v2156
    %v2217 = vrcp.pop %v2159
    %v2218 = vrcp.pop %v2162
    %v2219 = vrcp.pop %v2165
    %v2220 = vrcp.pop %v2168
    %v2221 = vrcp.pop %v2171
    %v2222 = vrcp.pop %v2174
    %v2223 = vrcp.pop %v2177
    %v2224 = vrcp.pop %v2180
    %v2225 = vrcp.pop %v2183
    %v2226 = vrcp.pop %v2186
    %v2227 = vrcp.pop %v2189
    %v2228 = vrcp.pop %v2192
    %v2229 = vrcp.pop %v2195
    %v2230 = vrcp.pop %v2198
    %v2231 = vmul.f32 %v2105, %v2199
    %v2232 = vmul.f32 %v2108, %v2200
    %v2233 = vmul.f32 %v2111, %v2201
    %v2234 = vmul.f32 %v2114, %v2202
    %v2235 = vmul.f32 %v2117, %v2203
    %v2236 = vmul.f32 %v2120, %v2204
    %v2237 = vmul.f32 %v2123, %v2205
    %v2238 = vmul.f32 %v2126, %v2206
    %v2239 = vmul.f32 %v2129, %v2207
    %v2240 = vmul.f32 %v2132, %v2208
    %v2241 = vmul.f32 %v2135, %v2209
    %v2242 = vmul.f32 %v2138, %v2210
    %v2243 = vmul.f32 %v2141, %v2211
    %v2244 = vmul.f32 %v2144, %v2212
    %v2245 = vmul.f32 %v2147, %v2213
    %v2246 = vmul.f32 %v2150, %v2214
    %v2247 = vmul.f32 %v2153, %v2215
    %v2248 = vmul.f32 %v2156, %v2216
    %v2249 = vmul.f32 %v2159, %v2217
    %v2250 = vmul.f32 %v2162, %v2218
    %v2251 = vmul.f32 %v2165, %v2219
    %v2252 = vmul.f32 %v2168, %v2220
    %v2253 = vmul.f32 %v2171, %v2221
    %v2254 = vmul.f32 %v2174, %v2222
    %v2255 = vmul.f32 %v2177, %v2223
    %v2256 = vmul.f32 %v2180, %v2224
    %v2257 = vmul.f32 %v2183, %v2225
    %v2258 = vmul.f32 %v2186, %v2226
    %v2259 = vmul.f32 %v2189, %v2227
    %v2260 = vmul.f32 %v2192, %v2228
    %v2261 = vmul.f32 %v2195, %v2229
    %v2262 = vmul.f32 %v2198, %v2230
    %v2263 = vsub.f32 2.0, %v2231
    %v2264 = vsub.f32 2.0, %v2232
    %v2265 = vsub.f32 2.0, %v2233
    %v2266 = vsub.f32 2.0, %v2234
    %v2267 = vsub.f32 2.0, %v2235
    %v2268 = vsub.f32 2.0, %v2236
    %v2269 = vsub.f32 2.0, %v2237
    %v2270 = vsub.f32 2.0, %v2238
    %v2271 = vsub.f32 2.0, %v2239
    %v2272 = vsub.f32 2.0, %v2240
    %v2273 = vsub.f32 2.0, %v2241
    %v2274 = vsub.f32 2.0, %v2242
    %v2275 = vsub.f32 2.0, %v2243
    %v2276 = vsub.f32 2.0, %v2244
    %v2277 = vsub.f32 2.0, %v2245
    %v2278 = vsub.f32 2.0, %v2246
    %v2279 = vsub.f32 2.0, %v2247
    %v2280 = vsub.f32 2.0, %v2248
    %v2281 = vsub.f32 2.0, %v2249
    %v2282 = vsub.f32 2.0, %v2250
    %v2283 = vsub.f32 2.0, %v2251
    %v2284 = vsub.f32 2.0, %v2252
    %v2285 = vsub.f32 2.0, %v2253
    %v2286 = vsub.f32 2.0, %v2254
    %v2287 = vsub.f32 2.0, %v2255
    %v2288 = vsub.f32 2.0, %v2256
    %v2289 = vsub.f32 2.0, %v2257
    %v2290 = vsub.f32 2.0, %v2258
    %v2291 = vsub.f32 2.0, %v2259
    %v2292 = vsub.f32 2.0, %v2260
    %v2293 = vsub.f32 2.0, %v2261
    %v2294 = vsub.f32 2.0, %v2262
    %v2295 = vmul.f32 %v2199, %v2263
    %v2296 = vmul.f32 %v2200, %v2264
    %v2297 = vmul.f32 %v2201, %v2265
    %v2298 = vmul.f32 %v2202, %v2266
    %v2299 = vmul.f32 %v2203, %v2267
    %v2300 = vmul.f32 %v2204, %v2268
    %v2301 = vmul.f32 %v2205, %v2269
    %v2302 = vmul.f32 %v2206, %v2270
    %v2303 = vmul.f32 %v2207, %v2271
    %v2304 = vmul.f32 %v2208, %v2272
    %v2305 = vmul.f32 %v2209, %v2273
    %v2306 = vmul.f32 %v2210, %v2274
    %v2307 = vmul.f32 %v2211, %v2275
    %v2308 = vmul.f32 %v2212, %v2276
    %v2309 = vmul.f32 %v2213, %v2277
    %v2310 = vmul.f32 %v2214, %v2278
    %v2311 = vmul.f32 %v2215, %v2279
    %v2312 = vmul.f32 %v2216, %v2280
    %v2313 = vmul.f32 %v2217, %v2281
    %v2314 = vmul.f32 %v2218, %v2282
    %v2315 = vmul.f32 %v2219, %v2283
    %v2316 = vmul.f32 %v2220, %v2284
    %v2317 = vmul.f32 %v2221, %v2285
    %v2318 = vmul.f32 %v2222, %v2286
    %v2319 = vmul.f32 %v2223, %v2287
    %v2320 = vmul.f32 %v2224, %v2288
    %v2321 = vmul.f32 %v2225, %v2289
    %v2322 = vmul.f32 %v2226, %v2290
    %v2323 = vmul.f32 %v2227, %v2291
    %v2324 = vmul.f32 %v2228, %v2292
    %v2325 = vmul.f32 %v2229, %v2293
    %v2326 = vmul.f32 %v2230, %v2294
    %v2327 = vmul.f32 %v1976, %v2295
    %v2328 = vmul.f32 %v1978, %v2295
    %v2329 = vmul.f32 %v1980, %v2296
    %v2330 = vmul.f32 %v1982, %v2296
    %v2331 = vmul.f32 %v1984, %v2297
    %v2332 = vmul.f32 %v1986, %v2297
    %v2333 = vmul.f32 %v1988, %v2298
    %v2334 = vmul.f32 %v1990, %v2298
    %v2335 = vmul.f32 %v1992, %v2299
    %v2336 = vmul.f32 %v1994, %v2299
    %v2337 = vmul.f32 %v1996, %v2300
    %v2338 = vmul.f32 %v1998, %v2300
    %v2339 = vmul.f32 %v2000, %v2301
    %v2340 = vmul.f32 %v2002, %v2301
    %v2341 = vmul.f32 %v2004, %v2302
    %v2342 = vmul.f32 %v2006, %v2302
    %v2343 = vmul.f32 %v2008, %v2303
    %v2344 = vmul.f32 %v2010, %v2303
    %v2345 = vmul.f32 %v2012, %v2304
    %v2346 = vmul.f32 %v2014, %v2304
    %v2347 = vmul.f32 %v2016, %v2305
    %v2348 = vmul.f32 %v2018, %v2305
    %v2349 = vmul.f32 %v2020, %v2306
    %v2350 = vmul.f32 %v2022, %v2306
    %v2351 = vmul.f32 %v2024, %v2307
    %v2352 = vmul.f32 %v2026, %v2307
    %v2353 = vmul.f32 %v2028, %v2308
    %v2354 = vmul.f32 %v2030, %v2308
    %v2355 = vmul.f32 %v2032, %v2309
    %v2356 = vmul.f32 %v2034, %v2309
    %v2357 = vmul.f32 %v2036, %v2310
    %v2358 = vmul.f32 %v2038, %v2310
    %v2359 = vmul.f32 %v2040, %v2311
    %v2360 = vmul.f32 %v2042, %v2311
    %v2361 = vmul.f32 %v2044, %v2312
    %v2362 = vmul.f32 %v2046, %v2312
    %v2363 = vmul.f32 %v2048, %v2313
    %v2364 = vmul.f32 %v2050, %v2313
    %v2365 = vmul.f32 %v2052, %v2314
    %v2366 = vmul.f32 %v2054, %v2314
    %v2367 = vmul.f32 %v2056, %v2315
    %v2368 = vmul.f32 %v2058, %v2315
    %v2369 = vmul.f32 %v2060, %v2316
    %v2370 = vmul.f32 %v2062, %v2316
    %v2371 = vmul.f32 %v2064, %v2317
    %v2372 = vmul.f32 %v2066, %v2317
    %v2373 = vmul.f32 %v2068, %v2318
    %v2374 = vmul.f32 %v2070, %v2318
    %v2375 = vmul.f32 %v2072, %v2319
    %v2376 = vmul.f32 %v2074, %v2319
    %v2377 = vmul.f32 %v2076, %v2320
    %v2378 = vmul.f32 %v2078, %v2320
    %v2379 = vmul.f32 %v2080, %v2321
    %v2380 = vmul.f32 %v2082, %v2321
    %v2381 = vmul.f32 %v2084, %v2322
    %v2382 = vmul.f32 %v2086, %v2322
    %v2383 = vmul.f32 %v2088, %v2323
    %v2384 = vmul.f32 %v2090, %v2323
    %v2385 = vmul.f32 %v2092, %v2324
    %v2386 = vmul.f32 %v2094, %v2324
    %v2387 = vmul.f32 %v2096, %v2325
    %v2388 = vmul.f32 %v2098, %v2325
    %v2389 = vmul.f32 %v2100, %v2326
    %v2390 = vmul.f32 %v2102, %v2326
    %2391 = vmatprep.subr.mxu0 %v2328
    %2392 = vmatpush1.xpose.msra.mxu0 %v2327
    %2393 = vmatprep.subr.mxu0 %v2330
    %2394 = vmatpush1.xpose.msra.mxu0 %v2329
    %2395 = vmatprep.subr.mxu0 %v2332
    %2396 = vmatpush1.xpose.msra.mxu0 %v2331
    %2397 = vmatprep.subr.mxu0 %v2334
    %2398 = vmatpush1.xpose.msra.mxu0 %v2333
    %2399 = vmatprep.subr.mxu0 %v2336
    %2400 = vmatpush1.xpose.msra.mxu0 %v2335
    %2401 = vmatprep.subr.mxu0 %v2338
    %2402 = vmatpush1.xpose.msra.mxu0 %v2337
    %2403 = vmatprep.subr.mxu0 %v2340
    %2404 = vmatpush1.xpose.msra.mxu0 %v2339
    %2405 = vmatprep.subr.mxu0 %v2342
    %2406 = vmatpush1.xpose.msra.mxu0 %v2341
    %2407 = vmatprep.subr.mxu0 %v2344
    %2408 = vmatpush1.xpose.msra.mxu0 %v2343
    %2409 = vmatprep.subr.mxu0 %v2346
    %2410 = vmatpush1.xpose.msra.mxu0 %v2345
    %2411 = vmatprep.subr.mxu0 %v2348
    %2412 = vmatpush1.xpose.msra.mxu0 %v2347
    %2413 = vmatprep.subr.mxu0 %v2350
    %2414 = vmatpush1.xpose.msra.mxu0 %v2349
    %2415 = vmatprep.subr.mxu0 %v2352
    %2416 = vmatpush1.xpose.msra.mxu0 %v2351
    %2417 = vmatprep.subr.mxu0 %v2354
    %2418 = vmatpush1.xpose.msra.mxu0 %v2353
    %2419 = vmatprep.subr.mxu0 %v2356
    %2420 = vmatpush1.xpose.msra.mxu0 %v2355
    %2421 = vmatprep.subr.mxu0 %v2358
    %2422 = vmatpush1.xpose.msra.mxu0 %v2357
    %2423 = vmatprep.subr.mxu0 %v2360
    %2424 = vmatpush1.xpose.msra.mxu0 %v2359
    %2425 = vmatprep.subr.mxu0 %v2362
    %2426 = vmatpush1.xpose.msra.mxu0 %v2361
    %2427 = vmatprep.subr.mxu0 %v2364
    %2428 = vmatpush1.xpose.msra.mxu0 %v2363
    %2429 = vmatprep.subr.mxu0 %v2366
    %2430 = vmatpush1.xpose.msra.mxu0 %v2365
    %2431 = vmatprep.subr.mxu0 %v2368
    %2432 = vmatpush1.xpose.msra.mxu0 %v2367
    %2433 = vmatprep.subr.mxu0 %v2370
    %2434 = vmatpush1.xpose.msra.mxu0 %v2369
    %2435 = vmatprep.subr.mxu0 %v2372
    %2436 = vmatpush1.xpose.msra.mxu0 %v2371
    %2437 = vmatprep.subr.mxu0 %v2374
    %2438 = vmatpush1.xpose.msra.mxu0 %v2373
    %2439 = vmatprep.subr.mxu0 %v2376
    %2440 = vmatpush1.xpose.msra.mxu0 %v2375
    %2441 = vmatprep.subr.mxu0 %v2378
    %2442 = vmatpush1.xpose.msra.mxu0 %v2377
    %2443 = vmatprep.subr.mxu0 %v2380
    %2444 = vmatpush1.xpose.msra.mxu0 %v2379
    %2445 = vmatprep.subr.mxu0 %v2382
    %2446 = vmatpush1.xpose.msra.mxu0 %v2381
    %2447 = vmatprep.subr.mxu0 %v2384
    %2448 = vmatpush1.xpose.msra.mxu0 %v2383
    %2449 = vmatprep.subr.mxu0 %v2386
    %2450 = vmatpush1.xpose.msra.mxu0 %v2385
    %2451 = vmatprep.subr.mxu0 %v2388
    %2452 = vmatpush1.xpose.msra.mxu0 %v2387
    %2453 = vmatprep.subr.mxu0 %v2390
    %2454 = vmatpush1.xpose.msra.mxu0 %v2389
    %2455 = vmatprep.mubr.f32.mxu0 %v1390
    %2456 = vmatmul.mubr.f32.gmra.mrb[0].mxu0 %v1388
    %v2457 = vpop.f32.mrb[0].mxu0
    %v2458 = vadd.f32 0.0, %v2457
    %v2459 = vpop.f32.mrb[0].mxu0
    %v2460 = vadd.f32 0.0, %v2459
    %2461 = vmatprep.mubr.f32.mxu0 %v1396
    %2462 = vmatmul.mubr.f32.gmra.mrb[0].mxu0 %v1394
    %v2463 = vpop.f32.mrb[0].mxu0
    %v2464 = vadd.f32 0.0, %v2463
    %v2465 = vpop.f32.mrb[0].mxu0
    %v2466 = vadd.f32 0.0, %v2465
    %2467 = vdwg.mxu0
    %v2468 = vmul.f32 %v1227, %v2458
    %v2469 = vmul.f32 %v1227, %v2460
    %v2470 = vmul.f32 %v1227, %v2464
    %v2471 = vmul.f32 %v1227, %v2466
    %v2472 = vadd.f32 %v2468, %v1305
    %v2473 = vadd.f32 %v2469, %v1306
    %v2474 = vadd.f32 %v2470, %v1307
    %v2475 = vadd.f32 %v2471, %v1308
    %s2476 = scalar_lea.vmem [#allocation3], 32
    %2477 = vst [vmem:[%s2476] sm:$0xff] %v2472
    %2478 = vst [vmem:[%s2476 + $0x8] sm:$0xff] %v2473
    %2479 = vst [vmem:[%s2476 + $0x10] sm:$0xff] %v2474
    %2480 = vst [vmem:[%s2476 + $0x18] sm:$0xff] %v2475
    %s2481 = scalar_lea.vmem [#allocation5], 512
    %2482 = vst [vmem:[%s2481] sm:$0xff] %v2327
    %2483 = vst [vmem:[%s2481 + $0x8] sm:$0xff] %v2328
    %2484 = vst [vmem:[%s2481 + $0x10] sm:$0xff] %v2329
    %2485 = vst [vmem:[%s2481 + $0x18] sm:$0xff] %v2330
    %2486 = vst [vmem:[%s2481 + $0x20] sm:$0xff] %v2331
    %2487 = vst [vmem:[%s2481 + $0x28] sm:$0xff] %v2332
    %2488 = vst [vmem:[%s2481 + $0x30] sm:$0xff] %v2333
    %2489 = vst [vmem:[%s2481 + $0x38] sm:$0xff] %v2334
    %2490 = vst [vmem:[%s2481 + $0x40] sm:$0xff] %v2335
    %2491 = vst [vmem:[%s2481 + $0x48] sm:$0xff] %v2336
    %2492 = vst [vmem:[%s2481 + $0x50] sm:$0xff] %v2337
    %2493 = vst [vmem:[%s2481 + $0x58] sm:$0xff] %v2338
    %2494 = vst [vmem:[%s2481 + $0x60] sm:$0xff] %v2339
    %2495 = vst [vmem:[%s2481 + $0x68] sm:$0xff] %v2340
    %2496 = vst [vmem:[%s2481 + $0x70] sm:$0xff] %v2341
    %2497 = vst [vmem:[%s2481 + $0x78] sm:$0xff] %v2342
    %2498 = vst [vmem:[%s2481 + $0x80] sm:$0xff] %v2343
    %2499 = vst [vmem:[%s2481 + $0x88] sm:$0xff] %v2344
    %2500 = vst [vmem:[%s2481 + $0x90] sm:$0xff] %v2345
    %2501 = vst [vmem:[%s2481 + $0x98] sm:$0xff] %v2346
    %2502 = vst [vmem:[%s2481 + $0xa0] sm:$0xff] %v2347
    %2503 = vst [vmem:[%s2481 + $0xa8] sm:$0xff] %v2348
    %2504 = vst [vmem:[%s2481 + $0xb0] sm:$0xff] %v2349
    %2505 = vst [vmem:[%s2481 + $0xb8] sm:$0xff] %v2350
    %2506 = vst [vmem:[%s2481 + $0xc0] sm:$0xff] %v2351
    %2507 = vst [vmem:[%s2481 + $0xc8] sm:$0xff] %v2352
    %2508 = vst [vmem:[%s2481 + $0xd0] sm:$0xff] %v2353
    %2509 = vst [vmem:[%s2481 + $0xd8] sm:$0xff] %v2354
    %2510 = vst [vmem:[%s2481 + $0xe0] sm:$0xff] %v2355
    %2511 = vst [vmem:[%s2481 + $0xe8] sm:$0xff] %v2356
    %2512 = vst [vmem:[%s2481 + $0xf0] sm:$0xff] %v2357
    %2513 = vst [vmem:[%s2481 + $0xf8] sm:$0xff] %v2358
    %2514 = vst [vmem:[%s2481 + $0x100] sm:$0xff] %v2359
    %2515 = vst [vmem:[%s2481 + $0x108] sm:$0xff] %v2360
    %2516 = vst [vmem:[%s2481 + $0x110] sm:$0xff] %v2361
    %2517 = vst [vmem:[%s2481 + $0x118] sm:$0xff] %v2362
    %2518 = vst [vmem:[%s2481 + $0x120] sm:$0xff] %v2363
    %2519 = vst [vmem:[%s2481 + $0x128] sm:$0xff] %v2364
    %2520 = vst [vmem:[%s2481 + $0x130] sm:$0xff] %v2365
    %2521 = vst [vmem:[%s2481 + $0x138] sm:$0xff] %v2366
    %2522 = vst [vmem:[%s2481 + $0x140] sm:$0xff] %v2367
    %2523 = vst [vmem:[%s2481 + $0x148] sm:$0xff] %v2368
    %2524 = vst [vmem:[%s2481 + $0x150] sm:$0xff] %v2369
    %2525 = vst [vmem:[%s2481 + $0x158] sm:$0xff] %v2370
    %2526 = vst [vmem:[%s2481 + $0x160] sm:$0xff] %v2371
    %2527 = vst [vmem:[%s2481 + $0x168] sm:$0xff] %v2372
    %2528 = vst [vmem:[%s2481 + $0x170] sm:$0xff] %v2373
    %2529 = vst [vmem:[%s2481 + $0x178] sm:$0xff] %v2374
    %2530 = vst [vmem:[%s2481 + $0x180] sm:$0xff] %v2375
    %2531 = vst [vmem:[%s2481 + $0x188] sm:$0xff] %v2376
    %2532 = vst [vmem:[%s2481 + $0x190] sm:$0xff] %v2377
    %2533 = vst [vmem:[%s2481 + $0x198] sm:$0xff] %v2378
    %2534 = vst [vmem:[%s2481 + $0x1a0] sm:$0xff] %v2379
    %2535 = vst [vmem:[%s2481 + $0x1a8] sm:$0xff] %v2380
    %2536 = vst [vmem:[%s2481 + $0x1b0] sm:$0xff] %v2381
    %2537 = vst [vmem:[%s2481 + $0x1b8] sm:$0xff] %v2382
    %2538 = vst [vmem:[%s2481 + $0x1c0] sm:$0xff] %v2383
    %2539 = vst [vmem:[%s2481 + $0x1c8] sm:$0xff] %v2384
    %2540 = vst [vmem:[%s2481 + $0x1d0] sm:$0xff] %v2385
    %2541 = vst [vmem:[%s2481 + $0x1d8] sm:$0xff] %v2386
    %2542 = vst [vmem:[%s2481 + $0x1e0] sm:$0xff] %v2387
    %2543 = vst [vmem:[%s2481 + $0x1e8] sm:$0xff] %v2388
    %2544 = vst [vmem:[%s2481 + $0x1f0] sm:$0xff] %v2389
    %2545 = vst [vmem:[%s2481 + $0x1f8] sm:$0xff] %v2390
    // Predicated region
    $region18: #{tpu_custom_call.1} parent=1 // pred_check
      _
    $region19: #{tpu_custom_call.1} parent=1 // pred_check_branch
      %2547 = sbr.rel (0) target = $region21
    $region20: #{tpu_custom_call.1} parent=1 // pred_region
      %s2549 = ssub.s32 1024, 1024
      %2550 = vsyncadd [#allocation4], %s2549
      %s2551 = sshll.u32 [#allocation3], 4
      %s2552 = int_to_ptr.vmem [resolvable:$true] %s2551
      %2557 = dma.vmem_to_hbm [thread:$0]  %s2552, 1024, %s4, [#allocation4], 256, 256, 16
    $region21: #{tpu_custom_call.1} parent=1 // pred_fallthru
      _
    // Predicated region
    $region22: #{tpu_custom_call.1} parent=1 // pred_check
      _
    $region23: #{tpu_custom_call.1} parent=1 // pred_check_branch
      %2559 = sbr.rel (0) target = $region25
    $region24: #{tpu_custom_call.1} parent=1 // pred_region
      %s2561 = ssub.s32 16384, 16384
      %2562 = vsyncadd [#allocation6], %s2561
      %s2563 = sshll.u32 [#allocation5], 4
      %s2564 = int_to_ptr.vmem [resolvable:$true] %s2563
      %2569 = dma.vmem_to_hbm [thread:$0]  %s2564, 16384, %s5, [#allocation6], 256, 256, 16
    $region25: #{tpu_custom_call.1} parent=1 // pred_fallthru
      _
    // Predicated region
    $region26: #{tpu_custom_call.1} parent=1 // pred_check
      _
    $region27: #{tpu_custom_call.1} parent=1 // pred_check_branch
      %2571 = sbr.rel (0) target = $region29
    $region28: #{tpu_custom_call.1} parent=1 // pred_region
      %2572 = dma.done [#allocation4], 1024
    $region29: #{tpu_custom_call.1} parent=1 // pred_fallthru
      _
    // Predicated region
    $region30: #{tpu_custom_call.1} parent=1 // pred_check
      _
    $region31: #{tpu_custom_call.1} parent=1 // pred_check_branch
      %2574 = sbr.rel (0) target = $region33
    $region32: #{tpu_custom_call.1} parent=1 // pred_region
      %2575 = dma.done [#allocation6], 16384
    $region33: #{tpu_custom_call.1} parent=1 // pred_fallthru
      _
    %2576 = vsyncpa [#allocation4], 1
    %2577 = vsyncpa [#allocation6], 1

</llo_original>
